<compile_context>
chip_gen: v5e
topology: v5e:2x2
jax: 0.10.0
libtpu: 0.0.40
codegen_flags: <defaults>
</compile_context>

<pallas_src>
import functools

import jax
import jax.numpy as jnp
from jax import lax
from jax.experimental import pallas as pl
from jax.experimental.pallas import tpu as pltpu

DT = 0.01
EPS = 1e-8


def _hamiltonian_step(x, w1, b1, w2, b2, w3, w1t, w2t):
    """One evolve(dt) update on a (TB, D) tile. Returns (new_pos, new_mom)."""
    # ---- forward MLP ----
    z1 = jnp.dot(x, w1, preferred_element_type=jnp.float32) + b1       # (TB, H)
    a1 = jnp.tanh(z1)
    z2 = jnp.dot(a1, w2, preferred_element_type=jnp.float32) + b2      # (TB, H)
    a2 = jnp.tanh(z2)
    # H = a2 @ W3^T + b3  -- value not needed, only its gradient.

    # ---- analytic gradient of H.sum() w.r.t. x ----
    # Backward matmuls use the pre-transposed resident weights -> canonical MXU path.
    g2 = (1.0 - a2 * a2) * w3                                            # (TB, H)
    g1 = (1.0 - a1 * a1) * jnp.dot(g2, w2t,
                                   preferred_element_type=jnp.float32)  # (TB, H)
    dH = jnp.dot(g1, w1t, preferred_element_type=jnp.float32)           # (TB, D)

    # ---- Hamiltonian update ----
    half = x.shape[-1] // 2                      # lane-aligned when D/2 % 128 == 0
    pos = x[:, :half]
    mom = x[:, half:]
    new_pos = pos + DT * dH[:, half:]
    new_mom = mom - DT * dH[:, :half]
    # 1/(||m|| + eps) ~= rsqrt(||m||^2 + eps): single EUP op instead of VPU sqrt +
    # Newton reciprocal; the eps inside also keeps padded/dead rows finite.
    sumsq = jnp.sum(new_mom * new_mom, axis=-1, keepdims=True)
    new_mom = new_mom * lax.rsqrt(sumsq + EPS)
    return new_pos, new_mom


def hamiltonian_evolve_kernel(x_ref, w1_ref, b1_ref, w2_ref, b2_ref, w3_ref,
                              w1t_ref, w2t_ref, o_ref, *, num_steps):
    w1, b1 = w1_ref[...], b1_ref[...]
    w2, b2 = w2_ref[...], b2_ref[...]
    w3 = w3_ref[...]
    w1t, w2t = w1t_ref[...], w2t_ref[...]
    half = x_ref.shape[-1] // 2

    if num_steps == 1:
        # Single step (the module's forward): direct lane-aligned sliced stores.
        new_pos, new_mom = _hamiltonian_step(x_ref[...], w1, b1, w2, b2, w3, w1t, w2t)
        o_ref[:, :half] = new_pos.astype(o_ref.dtype)
        o_ref[:, half:] = new_mom.astype(o_ref.dtype)
    else:
        # Fused integration loop: state + weights stay VMEM-resident across steps,
        # x round-trips HBM exactly once.
        def body(_, pts):
            new_pos, new_mom = _hamiltonian_step(pts, w1, b1, w2, b2, w3, w1t, w2t)
            return jnp.concatenate([new_pos, new_mom], axis=-1)

        out = lax.fori_loop(0, num_steps, body, x_ref[...])
        o_ref[...] = out.astype(o_ref.dtype)


def hamiltonian_evolve(x, w1, b1, w2, b2, w3, *, block_b=None, num_steps=1):
    B, D = x.shape
    H = w1.shape[1]
    assert D % 2 == 0, "manifold_dim must be even (position/momentum split)"

    if block_b is None:
        # Default: two batch tiles. Even 'parallel' grid -> both v7x TensorCores used;
        # single-TC v5e/v6e only pay the per-grid-step fixed cost twice.
        block_b = B // 2 if (B % 16 == 0) else B
    tb = min(block_b, B)
    grid = (pl.cdiv(B, tb),)

    # VMEM budget (f32, bytes): double-buffered x + out tiles, resident weights
    # (incl. pre-transposed copies), ~4 (tb,H) intermediates. Must fit the smallest
    # default scoped limit (v5e: 16 MiB); re-derive tb per generation if scaling up.
    vmem_bytes = 4 * (2 * tb * D * 2            # x + out, double-buffered
                      + 2 * (D * H + H * H)     # W1, W1^T, W2, W2^T
                      + 3 * H                   # b1, b2, w3
                      + 4 * tb * H)             # live intermediates (rough)
    assert vmem_bytes < 16 * 1024 * 1024, f"tile too large for scoped VMEM: {vmem_bytes}"

    # Pre-transposed weights, computed once outside the kernel.
    w1t = jnp.transpose(w1)   # (H, D)
    w2t = jnp.transpose(w2)   # (H, H)

    # Weights/biases: constant index_map -> fetched once, VMEM-resident across the grid.
    resident = lambda shape: pl.BlockSpec(shape, lambda i: (0,) * len(shape))

    kernel = functools.partial(hamiltonian_evolve_kernel, num_steps=int(num_steps))

    return pl.pallas_call(
        kernel,
        out_shape=jax.ShapeDtypeStruct((B, D), x.dtype),
        grid_spec=pl.GridSpec(
            grid=grid,
            in_specs=[
                pl.BlockSpec((tb, D), lambda i: (i, 0)),   # x (tiled over batch)
                resident((D, H)),                          # W1
                resident((1, H)),                          # b1
                resident((H, H)),                          # W2
                resident((1, H)),                          # b2
                resident((1, H)),                          # W3
                resident((H, D)),                          # W1^T
                resident((H, H)),                          # W2^T
            ],
            out_specs=pl.BlockSpec((tb, D), lambda i: (i, 0)),
        ),
        # The update overwrites the state: donate x's HBM buffer to the output.
        input_output_aliases={0: 0},
        compiler_params=pltpu.CompilerParams(
            # Batch tiles independent: double-buffered DMA + megacore sharding on v7x.
            dimension_semantics=("parallel",)),
    )(x, w1, b1, w2, b2, w3, w1t, w2t)


def init_params(key, manifold_dim, hidden_dim):
    """Deterministic Linear-style init (uniform +/- 1/sqrt(fan_in)), float32."""
    ks = jax.random.split(key, 6)

    def u(k, shape, fan_in):
        bound = 1.0 / jnp.sqrt(float(fan_in))
        return jax.random.uniform(k, shape, jnp.float32, -bound, bound)

    w1 = u(ks[0], (manifold_dim, hidden_dim), manifold_dim)   # z1 = x @ W1 + b1
    b1 = u(ks[1], (1, hidden_dim), manifold_dim)
    w2 = u(ks[2], (hidden_dim, hidden_dim), hidden_dim)
    b2 = u(ks[3], (1, hidden_dim), hidden_dim)
    w3 = u(ks[4], (1, hidden_dim), hidden_dim)                # final Linear(H, 1) weight row
    # b3 (final bias) does not affect dH/dx -> unused in the kernel.
    return w1, b1, w2, b2, w3


def reference_evolve(x, w1, b1, w2, b2, w3, dt=DT):
    """Pure-JAX reference matching the PyTorch module semantics."""
    def H_sum(pts):
        a1 = jnp.tanh(pts @ w1 + b1)
        a2 = jnp.tanh(a1 @ w2 + b2)
        return jnp.sum(a2 @ w3.T)  # + b3 (constant, drops out of grad)

    dH = jax.grad(H_sum)(x)
    half = x.shape[-1] // 2
    pos, mom = x[:, :half], x[:, half:]
    new_pos = pos + dt * dH[:, half:]
    new_mom = mom - dt * dH[:, :half]
    new_mom = new_mom / (jnp.linalg.norm(new_mom, axis=-1, keepdims=True) + EPS)
    return jnp.concatenate([new_pos, new_mom], axis=-1)


if __name__ == "__main__":
    # Lane-aligned shapes: batch=256 (two 128-row tiles), manifold_dim=256, hidden=128.
    B, MANIFOLD_DIM, HIDDEN_DIM = 256, 256, 128
    NSTEPS = 5

    key = jax.random.PRNGKey(0)
    k_x, k_p = jax.random.split(key)
    x = jax.random.normal(k_x, (B, MANIFOLD_DIM), jnp.float32)
    w1, b1, w2, b2, w3 = init_params(k_p, MANIFOLD_DIM, HIDDEN_DIM)

    # References (computed BEFORE the kernel calls: x's buffer is donated to the output).
    ref1 = reference_evolve(x, w1, b1, w2, b2, w3)
    refN = x
    for _ in range(NSTEPS):
        refN = reference_evolve(refN, w1, b1, w2, b2, w3)
    x_multi = x + 0.0  # fresh buffer for the fused multi-step call

    # Single forward step (the module's forward()).
    out1 = jax.block_until_ready(hamiltonian_evolve(x, w1, b1, w2, b2, w3))
    # Fused multi-step integration (weights/state stay VMEM-resident inside the kernel).
    outN = jax.block_until_ready(
        hamiltonian_evolve(x_multi, w1, b1, w2, b2, w3, num_steps=NSTEPS))

    assert out1.shape == (B, MANIFOLD_DIM)
    assert jnp.allclose(out1, ref1, atol=1e-5, rtol=1e-5)
    assert jnp.allclose(outN, refN, atol=1e-4, rtol=1e-4)

    print("KERNEL_OK")
</pallas_src>

<mosaic_0001>
module attributes {stable_mosaic.version = 11 : i64} {
  func.func @hamiltonian_evolve_kernel(%arg0: i32, %arg1: memref<128x256xf32, #tpu.memory_space<vmem>>, %arg2: memref<256x128xf32, #tpu.memory_space<vmem>>, %arg3: memref<1x128xf32, #tpu.memory_space<vmem>>, %arg4: memref<128x128xf32, #tpu.memory_space<vmem>>, %arg5: memref<1x128xf32, #tpu.memory_space<vmem>>, %arg6: memref<1x128xf32, #tpu.memory_space<vmem>>, %arg7: memref<128x256xf32, #tpu.memory_space<vmem>>, %arg8: memref<128x128xf32, #tpu.memory_space<vmem>>, %arg9: memref<128x256xf32, #tpu.memory_space<vmem>>) attributes {dimension_semantics = [#tpu.dimension_semantics<parallel>], iteration_bounds = array<i64: 2>, scalar_prefetch = 0 : i64, scratch_operands = 0 : i64, tpu.core_type = #tpu.core_type<tc>, window_params = [{transform_indices = @transform_0, window_bounds = array<i64: 128, 256>}, {pipeline_mode = #tpu.pipeline_mode<synchronous>, transform_indices = @transform_1, window_bounds = array<i64: 256, 128>}, {pipeline_mode = #tpu.pipeline_mode<synchronous>, transform_indices = @transform_2, window_bounds = array<i64: 1, 128>}, {pipeline_mode = #tpu.pipeline_mode<synchronous>, transform_indices = @transform_3, window_bounds = array<i64: 128, 128>}, {pipeline_mode = #tpu.pipeline_mode<synchronous>, transform_indices = @transform_4, window_bounds = array<i64: 1, 128>}, {pipeline_mode = #tpu.pipeline_mode<synchronous>, transform_indices = @transform_5, window_bounds = array<i64: 1, 128>}, {pipeline_mode = #tpu.pipeline_mode<synchronous>, transform_indices = @transform_6, window_bounds = array<i64: 128, 256>}, {pipeline_mode = #tpu.pipeline_mode<synchronous>, transform_indices = @transform_7, window_bounds = array<i64: 128, 128>}, {transform_indices = @transform_8, window_bounds = array<i64: 128, 256>}]} {
    %c0 = arith.constant 0 : index
    %c0_0 = arith.constant 0 : index
    %0 = vector.load %arg2[%c0, %c0_0] : memref<256x128xf32, #tpu.memory_space<vmem>>, vector<256x128xf32>
    %c0_1 = arith.constant 0 : index
    %c0_2 = arith.constant 0 : index
    %1 = vector.load %arg3[%c0_1, %c0_2] : memref<1x128xf32, #tpu.memory_space<vmem>>, vector<1x128xf32>
    %c0_3 = arith.constant 0 : index
    %c0_4 = arith.constant 0 : index
    %2 = vector.load %arg4[%c0_3, %c0_4] : memref<128x128xf32, #tpu.memory_space<vmem>>, vector<128x128xf32>
    %c0_5 = arith.constant 0 : index
    %c0_6 = arith.constant 0 : index
    %3 = vector.load %arg5[%c0_5, %c0_6] : memref<1x128xf32, #tpu.memory_space<vmem>>, vector<1x128xf32>
    %c0_7 = arith.constant 0 : index
    %c0_8 = arith.constant 0 : index
    %4 = vector.load %arg6[%c0_7, %c0_8] : memref<1x128xf32, #tpu.memory_space<vmem>>, vector<1x128xf32>
    %c0_9 = arith.constant 0 : index
    %c0_10 = arith.constant 0 : index
    %5 = vector.load %arg7[%c0_9, %c0_10] : memref<128x256xf32, #tpu.memory_space<vmem>>, vector<128x256xf32>
    %c0_11 = arith.constant 0 : index
    %c0_12 = arith.constant 0 : index
    %6 = vector.load %arg8[%c0_11, %c0_12] : memref<128x128xf32, #tpu.memory_space<vmem>>, vector<128x128xf32>
    %c0_13 = arith.constant 0 : index
    %c0_14 = arith.constant 0 : index
    %7 = vector.load %arg1[%c0_13, %c0_14] : memref<128x256xf32, #tpu.memory_space<vmem>>, vector<128x256xf32>
    %cst = arith.constant dense<0.000000e+00> : vector<128x128xf32>
    %8 = tpu.matmul %7, %0, %cst {dimension_numbers = #tpu.dot_dimension_numbers<[1], [0], [0], [1], [0, 0, 1, 1], [], []>} : vector<128x256xf32>, vector<256x128xf32>, vector<128x128xf32> -> vector<128x128xf32>
    %9 = vector.broadcast %1 : vector<1x128xf32> to vector<128x128xf32>
    %10 = arith.addf %8, %9 : vector<128x128xf32>
    %11 = math.tanh %10 : vector<128x128xf32>
    %cst_15 = arith.constant dense<0.000000e+00> : vector<128x128xf32>
    %12 = tpu.matmul %11, %2, %cst_15 {dimension_numbers = #tpu.dot_dimension_numbers<[1], [0], [0], [1], [0, 0, 1, 1], [], []>} : vector<128x128xf32>, vector<128x128xf32>, vector<128x128xf32> -> vector<128x128xf32>
    %13 = vector.broadcast %3 : vector<1x128xf32> to vector<128x128xf32>
    %14 = arith.addf %12, %13 : vector<128x128xf32>
    %15 = math.tanh %14 : vector<128x128xf32>
    %16 = arith.mulf %15, %15 : vector<128x128xf32>
    %cst_16 = arith.constant 1.000000e+00 : f32
    %17 = vector.broadcast %cst_16 : f32 to vector<128x128xf32>
    %18 = arith.subf %17, %16 : vector<128x128xf32>
    %19 = vector.broadcast %4 : vector<1x128xf32> to vector<128x128xf32>
    %20 = arith.mulf %18, %19 : vector<128x128xf32>
    %21 = arith.mulf %11, %11 : vector<128x128xf32>
    %cst_17 = arith.constant 1.000000e+00 : f32
    %22 = vector.broadcast %cst_17 : f32 to vector<128x128xf32>
    %23 = arith.subf %22, %21 : vector<128x128xf32>
    %cst_18 = arith.constant dense<0.000000e+00> : vector<128x128xf32>
    %24 = tpu.matmul %20, %6, %cst_18 {dimension_numbers = #tpu.dot_dimension_numbers<[1], [0], [0], [1], [0, 0, 1, 1], [], []>} : vector<128x128xf32>, vector<128x128xf32>, vector<128x128xf32> -> vector<128x128xf32>
    %25 = arith.mulf %23, %24 : vector<128x128xf32>
    %cst_19 = arith.constant dense<0.000000e+00> : vector<128x256xf32>
    %26 = tpu.matmul %25, %5, %cst_19 {dimension_numbers = #tpu.dot_dimension_numbers<[1], [0], [0], [1], [0, 0, 1, 1], [], []>} : vector<128x128xf32>, vector<128x256xf32>, vector<128x256xf32> -> vector<128x256xf32>
    %27 = vector.extract_strided_slice %7 {offsets = [0, 0], sizes = [128, 128], strides = [1, 1]} : vector<128x256xf32> to vector<128x128xf32>
    %28 = vector.extract_strided_slice %7 {offsets = [0, 128], sizes = [128, 128], strides = [1, 1]} : vector<128x256xf32> to vector<128x128xf32>
    %29 = vector.extract_strided_slice %26 {offsets = [0, 128], sizes = [128, 128], strides = [1, 1]} : vector<128x256xf32> to vector<128x128xf32>
    %cst_20 = arith.constant 0.00999999977 : f32
    %30 = vector.broadcast %cst_20 : f32 to vector<128x128xf32>
    %31 = arith.mulf %30, %29 : vector<128x128xf32>
    %32 = arith.addf %27, %31 : vector<128x128xf32>
    %33 = vector.extract_strided_slice %26 {offsets = [0, 0], sizes = [128, 128], strides = [1, 1]} : vector<128x256xf32> to vector<128x128xf32>
    %cst_21 = arith.constant 0.00999999977 : f32
    %34 = vector.broadcast %cst_21 : f32 to vector<128x128xf32>
    %35 = arith.mulf %34, %33 : vector<128x128xf32>
    %36 = arith.subf %28, %35 : vector<128x128xf32>
    %37 = arith.mulf %36, %36 : vector<128x128xf32>
    %cst_22 = arith.constant dense<0.000000e+00> : vector<128xf32>
    %38 = vector.multi_reduction <add>, %37, %cst_22 [1] : vector<128x128xf32> to vector<128xf32>
    %39 = vector.shape_cast %38 : vector<128xf32> to vector<128x1xf32>
    %cst_23 = arith.constant 9.99999993E-9 : f32
    %40 = vector.broadcast %cst_23 : f32 to vector<128x1xf32>
    %41 = arith.addf %39, %40 : vector<128x1xf32>
    %42 = math.rsqrt %41 : vector<128x1xf32>
    %43 = vector.broadcast %42 : vector<128x1xf32> to vector<128x128xf32>
    %44 = arith.mulf %36, %43 : vector<128x128xf32>
    %c0_24 = arith.constant 0 : index
    %c0_25 = arith.constant 0 : index
    %45 = vector.load %arg9[%c0_24, %c0_25] : memref<128x256xf32, #tpu.memory_space<vmem>>, vector<128x128xf32>
    tpu.vector_store %arg9[%c0_24, %c0_25], %32 {strides = array<i32>} : memref<128x256xf32, #tpu.memory_space<vmem>>, vector<128x128xf32>,
    %c0_26 = arith.constant 0 : index
    %c128 = arith.constant 128 : index
    %46 = vector.load %arg9[%c0_26, %c128] : memref<128x256xf32, #tpu.memory_space<vmem>>, vector<128x128xf32>
    tpu.vector_store %arg9[%c0_26, %c128], %44 {strides = array<i32>} : memref<128x256xf32, #tpu.memory_space<vmem>>, vector<128x128xf32>,
    return
  }
  func.func @transform_0(%arg0: i32) -> (i32, i32) {
    %c0_i32 = arith.constant 0 : i32
    %c0_i32_0 = arith.constant 0 : i32
    return %arg0, %c0_i32 : i32, i32
  }
  func.func @transform_1(%arg0: i32) -> (i32, i32) {
    %c0_i32 = arith.constant 0 : i32
    %c0_i32_0 = arith.constant 0 : i32
    %c0_i32_1 = arith.constant 0 : i32
    return %c0_i32, %c0_i32_0 : i32, i32
  }
  func.func @transform_2(%arg0: i32) -> (i32, i32) {
    %c0_i32 = arith.constant 0 : i32
    %c0_i32_0 = arith.constant 0 : i32
    %c0_i32_1 = arith.constant 0 : i32
    return %c0_i32, %c0_i32_0 : i32, i32
  }
  func.func @transform_3(%arg0: i32) -> (i32, i32) {
    %c0_i32 = arith.constant 0 : i32
    %c0_i32_0 = arith.constant 0 : i32
    %c0_i32_1 = arith.constant 0 : i32
    return %c0_i32, %c0_i32_0 : i32, i32
  }
  func.func @transform_4(%arg0: i32) -> (i32, i32) {
    %c0_i32 = arith.constant 0 : i32
    %c0_i32_0 = arith.constant 0 : i32
    %c0_i32_1 = arith.constant 0 : i32
    return %c0_i32, %c0_i32_0 : i32, i32
  }
  func.func @transform_5(%arg0: i32) -> (i32, i32) {
    %c0_i32 = arith.constant 0 : i32
    %c0_i32_0 = arith.constant 0 : i32
    %c0_i32_1 = arith.constant 0 : i32
    return %c0_i32, %c0_i32_0 : i32, i32
  }
  func.func @transform_6(%arg0: i32) -> (i32, i32) {
    %c0_i32 = arith.constant 0 : i32
    %c0_i32_0 = arith.constant 0 : i32
    %c0_i32_1 = arith.constant 0 : i32
    return %c0_i32, %c0_i32_0 : i32, i32
  }
  func.func @transform_7(%arg0: i32) -> (i32, i32) {
    %c0_i32 = arith.constant 0 : i32
    %c0_i32_0 = arith.constant 0 : i32
    %c0_i32_1 = arith.constant 0 : i32
    return %c0_i32, %c0_i32_0 : i32, i32
  }
  func.func @transform_8(%arg0: i32) -> (i32, i32) {
    %c0_i32 = arith.constant 0 : i32
    %c0_i32_0 = arith.constant 0 : i32
    return %arg0, %c0_i32 : i32, i32
  }
}

</mosaic_0001>

<llo_original>
// kernel: tpu_custom_call.1
$region0: #{tpu_custom_call.1}
  #allocation0 [shape = 'u32[]', space=smem, size = 0x4, offset = 0x4, fixed_abs, tag = 'smem constant byte address 0x4 - core index']
  #allocation1 [shape = 'u32[72,128]{1,0:T(1,128)}', space=vmem, size = 0x9000, scoped, tag = 'internal scratch']
  %s0 = inlined_call_operand.hbm [shape: f32[256,256], index: 0, kind: input, shape index: {}, may-alias: {0,8}]
  %s1 = inlined_call_operand.vmem [shape: f32[256,128], index: 1, kind: input, shape index: {}]
  %s2 = inlined_call_operand.vmem [shape: f32[1,128], index: 2, kind: input, shape index: {}]
  %s3 = inlined_call_operand.vmem [shape: f32[128,128], index: 3, kind: input, shape index: {}]
  %s4 = inlined_call_operand.vmem [shape: f32[1,128], index: 4, kind: input, shape index: {}]
  %s5 = inlined_call_operand.vmem [shape: f32[1,128], index: 5, kind: input, shape index: {}]
  %s6 = inlined_call_operand.vmem [shape: f32[128,256], index: 6, kind: input, shape index: {}]
  %s7 = inlined_call_operand.vmem [shape: f32[128,128], index: 7, kind: input, shape index: {}]
  %s8 = inlined_call_operand.hbm [shape: f32[256,256], index: 8, kind: output, shape index: {}, may-alias: {0,8}]
  %s9 = sld [smem:[#allocation0]]
  $region69: #{tpu_custom_call.1} parent=0
    _
  %s11 = ssub.s32 1, %s9
  %s12 = scalar_select 0, %s11, %s9
  $region1: #{tpu_custom_call.1} parent=0
    #allocation2 [shape = 'u8[262144]{0}', space=vmem, size = 0x40000, scoped, tag = 'input window, operand 0']
    #allocation3 [shape = 's32[2]{0}', space=sflag, size = 0x8, scoped, tag = 'scoped memory for tpu_custom_call.1']
    #allocation4 [shape = 's32[2]{0}', space=sflag, size = 0x8, scoped, tag = 'scoped memory for tpu_custom_call.1']
    #allocation5 [shape = 'u8[262144]{0}', space=vmem, size = 0x40000, scoped, tag = 'output window, operand 0']
    %13 = vsyncpa [#allocation3], 0
    %s14 = scalar_lea.sflag [#allocation3], 1
    %15 = vsyncpa %s14, 0
    %16 = vsyncpa [#allocation4], 0
    %s17 = scalar_lea.sflag [#allocation4], 1
    %18 = vsyncpa %s17, 0
    loop: start=0, step=1, limit=4
    $region2: #{tpu_custom_call.1} parent=1 // loop_pre_header
      _
    $region3: #{tpu_custom_call.1} parent=1 // loop_header
      %s20 = sphi 0, %s24
      %p21 = scmp.ge.s32.totalorder %s20, 4
      %s30 = sphi 0, %s32
      %s33 = sphi 0, %s30
      %s34 = sphi 0, %s33
      %s50 = sphi 0, %s34
      %s54 = sphi 0, %s54
      %s56 = sphi 0, %s54
      %s57 = sphi 0, %s56
      %s71 = sphi 0, %s57
      %s75 = sphi 0, %s75
      %s77 = sphi 0, %s75
      %s78 = sphi 0, %s77
      %s92 = sphi 0, %s78
      %s96 = sphi 0, %s96
      %s98 = sphi 0, %s96
      %s99 = sphi 0, %s98
      %s113 = sphi 0, %s99
      %s117 = sphi 0, %s117
      %s119 = sphi 0, %s117
      %s120 = sphi 0, %s119
      %s134 = sphi 0, %s120
      %s138 = sphi 0, %s138
      %s140 = sphi 0, %s138
      %s141 = sphi 0, %s140
      %s155 = sphi 0, %s141
      %s159 = sphi 0, %s159
      %s161 = sphi 0, %s159
      %s162 = sphi 0, %s161
      %s176 = sphi 0, %s162
      %s180 = sphi 0, %s180
      %s182 = sphi 0, %s180
      %s183 = sphi 0, %s182
      %s197 = sphi 0, %s183
      %s203 = sphi 0, %s205
      %s206 = sphi 0, %s203
      %s207 = sphi 0, %s206
      %s223 = sphi 0, %s207
    $region4: #{tpu_custom_call.1} parent=1 // loop_header_branch
      %23 = sbr.rel (%p21) target = $region8
    $region5: #{tpu_custom_call.1} parent=1 // loop_body
      %s25 = ssub.s32 %s20, 1
      %s26 = ssub.s32 %s20, 2
      %s27 = sadd.s32 %s20, 1
      %s28 = ssub.s32 %s20, %s27
      %p29 = scmp.eq.s32.totalorder %s28, 0
      %s31 = sadd.s32 %s30, 1
      %s32 = scalar_select %p29, %s30, %s31
      %p35 = pneg %p29
      %p36 = scmp.eq.s32.totalorder %s20, 1
      %p37 = por %p35, %p36
      %p38 = scmp.ne.s32.totalorder %s30, %s33
      %p39 = scmp.eq.s32.totalorder %s20, 0
      %p40 = por %p38, %p39
      %p41 = scmp.ne.s32.totalorder %s30, %s33
      %p42 = scmp.eq.s32.totalorder %s25, 1
      %p43 = por %p41, %p42
      %p44 = scmp.ne.s32.totalorder %s33, %s34
      %p45 = scmp.eq.s32.totalorder %s25, 0
      %p46 = por %p44, %p45
      %p47 = scmp.ne.s32.totalorder %s33, %s34
      %p48 = scmp.eq.s32.totalorder %s26, 1
      %p49 = por %p47, %p48
      %p51 = scmp.ne.s32.totalorder %s34, %s50
      %p52 = scmp.eq.s32.totalorder %s26, 0
      %p53 = por %p51, %p52
      %s55 = sadd.s32 %s54, 1
      %p58 = scmp.eq.s32.totalorder %s20, 1
      %p59 = scmp.ne.s32.totalorder %s54, %s56
      %p60 = scmp.eq.s32.totalorder %s20, 0
      %p61 = por %p59, %p60
      %p62 = scmp.ne.s32.totalorder %s54, %s56
      %p63 = scmp.eq.s32.totalorder %s25, 1
      %p64 = por %p62, %p63
      %p65 = scmp.ne.s32.totalorder %s56, %s57
      %p66 = scmp.eq.s32.totalorder %s25, 0
      %p67 = por %p65, %p66
      %p68 = scmp.ne.s32.totalorder %s56, %s57
      %p69 = scmp.eq.s32.totalorder %s26, 1
      %p70 = por %p68, %p69
      %p72 = scmp.ne.s32.totalorder %s57, %s71
      %p73 = scmp.eq.s32.totalorder %s26, 0
      %p74 = por %p72, %p73
      %s76 = sadd.s32 %s75, 1
      %p79 = scmp.eq.s32.totalorder %s20, 1
      %p80 = scmp.ne.s32.totalorder %s75, %s77
      %p81 = scmp.eq.s32.totalorder %s20, 0
      %p82 = por %p80, %p81
      %p83 = scmp.ne.s32.totalorder %s75, %s77
      %p84 = scmp.eq.s32.totalorder %s25, 1
      %p85 = por %p83, %p84
      %p86 = scmp.ne.s32.totalorder %s77, %s78
      %p87 = scmp.eq.s32.totalorder %s25, 0
      %p88 = por %p86, %p87
      %p89 = scmp.ne.s32.totalorder %s77, %s78
      %p90 = scmp.eq.s32.totalorder %s26, 1
      %p91 = por %p89, %p90
      %p93 = scmp.ne.s32.totalorder %s78, %s92
      %p94 = scmp.eq.s32.totalorder %s26, 0
      %p95 = por %p93, %p94
      %s97 = sadd.s32 %s96, 1
      %p100 = scmp.eq.s32.totalorder %s20, 1
      %p101 = scmp.ne.s32.totalorder %s96, %s98
      %p102 = scmp.eq.s32.totalorder %s20, 0
      %p103 = por %p101, %p102
      %p104 = scmp.ne.s32.totalorder %s96, %s98
      %p105 = scmp.eq.s32.totalorder %s25, 1
      %p106 = por %p104, %p105
      %p107 = scmp.ne.s32.totalorder %s98, %s99
      %p108 = scmp.eq.s32.totalorder %s25, 0
      %p109 = por %p107, %p108
      %p110 = scmp.ne.s32.totalorder %s98, %s99
      %p111 = scmp.eq.s32.totalorder %s26, 1
      %p112 = por %p110, %p111
      %p114 = scmp.ne.s32.totalorder %s99, %s113
      %p115 = scmp.eq.s32.totalorder %s26, 0
      %p116 = por %p114, %p115
      %s118 = sadd.s32 %s117, 1
      %p121 = scmp.eq.s32.totalorder %s20, 1
      %p122 = scmp.ne.s32.totalorder %s117, %s119
      %p123 = scmp.eq.s32.totalorder %s20, 0
      %p124 = por %p122, %p123
      %p125 = scmp.ne.s32.totalorder %s117, %s119
      %p126 = scmp.eq.s32.totalorder %s25, 1
      %p127 = por %p125, %p126
      %p128 = scmp.ne.s32.totalorder %s119, %s120
      %p129 = scmp.eq.s32.totalorder %s25, 0
      %p130 = por %p128, %p129
      %p131 = scmp.ne.s32.totalorder %s119, %s120
      %p132 = scmp.eq.s32.totalorder %s26, 1
      %p133 = por %p131, %p132
      %p135 = scmp.ne.s32.totalorder %s120, %s134
      %p136 = scmp.eq.s32.totalorder %s26, 0
      %p137 = por %p135, %p136
      %s139 = sadd.s32 %s138, 1
      %p142 = scmp.eq.s32.totalorder %s20, 1
      %p143 = scmp.ne.s32.totalorder %s138, %s140
      %p144 = scmp.eq.s32.totalorder %s20, 0
      %p145 = por %p143, %p144
      %p146 = scmp.ne.s32.totalorder %s138, %s140
      %p147 = scmp.eq.s32.totalorder %s25, 1
      %p148 = por %p146, %p147
      %p149 = scmp.ne.s32.totalorder %s140, %s141
      %p150 = scmp.eq.s32.totalorder %s25, 0
      %p151 = por %p149, %p150
      %p152 = scmp.ne.s32.totalorder %s140, %s141
      %p153 = scmp.eq.s32.totalorder %s26, 1
      %p154 = por %p152, %p153
      %p156 = scmp.ne.s32.totalorder %s141, %s155
      %p157 = scmp.eq.s32.totalorder %s26, 0
      %p158 = por %p156, %p157
      %s160 = sadd.s32 %s159, 1
      %p163 = scmp.eq.s32.totalorder %s20, 1
      %p164 = scmp.ne.s32.totalorder %s159, %s161
      %p165 = scmp.eq.s32.totalorder %s20, 0
      %p166 = por %p164, %p165
      %p167 = scmp.ne.s32.totalorder %s159, %s161
      %p168 = scmp.eq.s32.totalorder %s25, 1
      %p169 = por %p167, %p168
      %p170 = scmp.ne.s32.totalorder %s161, %s162
      %p171 = scmp.eq.s32.totalorder %s25, 0
      %p172 = por %p170, %p171
      %p173 = scmp.ne.s32.totalorder %s161, %s162
      %p174 = scmp.eq.s32.totalorder %s26, 1
      %p175 = por %p173, %p174
      %p177 = scmp.ne.s32.totalorder %s162, %s176
      %p178 = scmp.eq.s32.totalorder %s26, 0
      %p179 = por %p177, %p178
      %s181 = sadd.s32 %s180, 1
      %p184 = scmp.eq.s32.totalorder %s20, 1
      %p185 = scmp.ne.s32.totalorder %s180, %s182
      %p186 = scmp.eq.s32.totalorder %s20, 0
      %p187 = por %p185, %p186
      %p188 = scmp.ne.s32.totalorder %s180, %s182
      %p189 = scmp.eq.s32.totalorder %s25, 1
      %p190 = por %p188, %p189
      %p191 = scmp.ne.s32.totalorder %s182, %s183
      %p192 = scmp.eq.s32.totalorder %s25, 0
      %p193 = por %p191, %p192
      %p194 = scmp.ne.s32.totalorder %s182, %s183
      %p195 = scmp.eq.s32.totalorder %s26, 1
      %p196 = por %p194, %p195
      %p198 = scmp.ne.s32.totalorder %s183, %s197
      %p199 = scmp.eq.s32.totalorder %s26, 0
      %p200 = por %p198, %p199
      %s201 = ssub.s32 %s20, %s27
      %p202 = scmp.eq.s32.totalorder %s201, 0
      %s204 = sadd.s32 %s203, 1
      %s205 = scalar_select %p202, %s203, %s204
      %p208 = pneg %p202
      %p209 = scmp.eq.s32.totalorder %s20, 1
      %p210 = por %p208, %p209
      %p211 = scmp.ne.s32.totalorder %s203, %s206
      %p212 = scmp.eq.s32.totalorder %s20, 0
      %p213 = por %p211, %p212
      %p214 = scmp.ne.s32.totalorder %s203, %s206
      %p215 = scmp.eq.s32.totalorder %s25, 1
      %p216 = por %p214, %p215
      %p217 = scmp.ne.s32.totalorder %s206, %s207
      %p218 = scmp.eq.s32.totalorder %s25, 0
      %p219 = por %p217, %p218
      %p220 = scmp.ne.s32.totalorder %s206, %s207
      %p221 = scmp.eq.s32.totalorder %s26, 1
      %p222 = por %p220, %p221
      %p224 = scmp.ne.s32.totalorder %s207, %s223
      %p225 = scmp.eq.s32.totalorder %s26, 0
      %p226 = por %p224, %p225
      %p227 = scmp.le.s32.totalorder 1, %s20
      %p228 = scmp.lt.s32.totalorder %s20, 3
      %p229 = pnand %p227, %p228
      %p230 = pneg %p229
      // Predicated region
      $region9: #{tpu_custom_call.1} parent=5 // pred_check
        _
      $region10: #{tpu_custom_call.1} parent=5 // pred_check_branch
        %232 = sbr.rel (%p229) target = $region12
      $region11: #{tpu_custom_call.1} parent=5 // pred_region
        %s233 = ssub.s32 %s20, 1
        // Predicated region
        $region13: #{tpu_custom_call.1} parent=11 // pred_check
          %p234 = pneg %p67
        $region14: #{tpu_custom_call.1} parent=11 // pred_check_branch
          %236 = sbr.rel (%p234) target = $region16
        $region15: #{tpu_custom_call.1} parent=11 // pred_region
          _
        $region16: #{tpu_custom_call.1} parent=11 // pred_fallthru
          _
        // Predicated region
        $region17: #{tpu_custom_call.1} parent=11 // pred_check
          %p237 = pneg %p88
        $region18: #{tpu_custom_call.1} parent=11 // pred_check_branch
          %239 = sbr.rel (%p237) target = $region20
        $region19: #{tpu_custom_call.1} parent=11 // pred_region
          _
        $region20: #{tpu_custom_call.1} parent=11 // pred_fallthru
          _
        // Predicated region
        $region21: #{tpu_custom_call.1} parent=11 // pred_check
          %p240 = pneg %p109
        $region22: #{tpu_custom_call.1} parent=11 // pred_check_branch
          %242 = sbr.rel (%p240) target = $region24
        $region23: #{tpu_custom_call.1} parent=11 // pred_region
          _
        $region24: #{tpu_custom_call.1} parent=11 // pred_fallthru
          _
        // Predicated region
        $region25: #{tpu_custom_call.1} parent=11 // pred_check
          %p243 = pneg %p130
        $region26: #{tpu_custom_call.1} parent=11 // pred_check_branch
          %245 = sbr.rel (%p243) target = $region28
        $region27: #{tpu_custom_call.1} parent=11 // pred_region
          _
        $region28: #{tpu_custom_call.1} parent=11 // pred_fallthru
          _
        // Predicated region
        $region29: #{tpu_custom_call.1} parent=11 // pred_check
          %p246 = pneg %p151
        $region30: #{tpu_custom_call.1} parent=11 // pred_check_branch
          %248 = sbr.rel (%p246) target = $region32
        $region31: #{tpu_custom_call.1} parent=11 // pred_region
          _
        $region32: #{tpu_custom_call.1} parent=11 // pred_fallthru
          _
        // Predicated region
        $region33: #{tpu_custom_call.1} parent=11 // pred_check
          %p249 = pneg %p172
        $region34: #{tpu_custom_call.1} parent=11 // pred_check_branch
          %251 = sbr.rel (%p249) target = $region36
        $region35: #{tpu_custom_call.1} parent=11 // pred_region
          _
        $region36: #{tpu_custom_call.1} parent=11 // pred_fallthru
          _
        // Predicated region
        $region37: #{tpu_custom_call.1} parent=11 // pred_check
          %p252 = pneg %p193
        $region38: #{tpu_custom_call.1} parent=11 // pred_check_branch
          %254 = sbr.rel (%p252) target = $region40
        $region39: #{tpu_custom_call.1} parent=11 // pred_region
          _
        $region40: #{tpu_custom_call.1} parent=11 // pred_fallthru
          _
      $region12: #{tpu_custom_call.1} parent=5 // pred_fallthru
        _
      %p255 = scmp.lt.s32.totalorder %s20, 2
      // Predicated region
      $region41: #{tpu_custom_call.1} parent=5 // pred_check
        %p256 = pneg %p255
      $region42: #{tpu_custom_call.1} parent=5 // pred_check_branch
        %258 = sbr.rel (%p256) target = $region44
      $region43: #{tpu_custom_call.1} parent=5 // pred_region
        // Predicated region
        $region45: #{tpu_custom_call.1} parent=43 // pred_check
          %p259 = pneg %p40
        $region46: #{tpu_custom_call.1} parent=43 // pred_check_branch
          %261 = sbr.rel (%p259) target = $region48
        $region47: #{tpu_custom_call.1} parent=43 // pred_region
          %s262 = sand.u32 %s30, 1
          %s263 = scalar_lea.sflag [#allocation3], %s262
          %s264 = sand.u32 %s30, 1
          %s265 = smul.addr %s264, 256
          %s266 = scalar_lea.vmem [#allocation2], %s265
          %s267 = smul.u32 16, %s20
          %269 = vsyncadd %s263, 0
          %s270 = smul.addr %s267, 2
          %s271 = smul.addr %s270, 8
          %s272 = scalar_lea.hbm %s0, %s271
          %s273 = sshll.u32 %s272, 4
          %s274 = int_to_ptr.hbm [resolvable:$true] %s273
          %s275 = sshll.u32 %s266, 4
          %s276 = int_to_ptr.vmem [resolvable:$true] %s275
          %281 = dma.hbm_to_vmem [thread:$0]  %s274, 4096, %s276, %s263, 256, 256, 16
        $region48: #{tpu_custom_call.1} parent=43 // pred_fallthru
          _
      $region44: #{tpu_custom_call.1} parent=5 // pred_fallthru
        _
      %p282 = scmp.le.s32.totalorder 1, %s20
      %p283 = scmp.lt.s32.totalorder %s20, 3
      %p284 = pnand %p282, %p283
      %p285 = pneg %p284
      // Predicated region
      $region49: #{tpu_custom_call.1} parent=5 // pred_check
        _
      $region50: #{tpu_custom_call.1} parent=5 // pred_check_branch
        %287 = sbr.rel (%p284) target = $region52
      $region51: #{tpu_custom_call.1} parent=5 // pred_region
        %s288 = ssub.s32 %s20, 1
        %s289 = sand.u32 %s33, 1
        %s290 = scalar_lea.sflag [#allocation3], %s289
        %s291 = sand.u32 %s33, 1
        %s292 = smul.addr %s291, 256
        %s293 = scalar_lea.vmem [#allocation2], %s292
        // Predicated region
        $region53: #{tpu_custom_call.1} parent=51 // pred_check
          %p294 = pneg %p46
        $region54: #{tpu_custom_call.1} parent=51 // pred_check_branch
          %296 = sbr.rel (%p294) target = $region56
        $region55: #{tpu_custom_call.1} parent=51 // pred_region
          %298 = dma.done %s290, 4096
        $region56: #{tpu_custom_call.1} parent=51 // pred_fallthru
          _
        %s299 = sand.u32 %s33, 1
        %s300 = scalar_lea.sflag [#allocation3], %s299
        %s301 = sand.u32 %s33, 1
        %s302 = smul.addr %s301, 256
        %s303 = scalar_lea.vmem [#allocation2], %s302
        %p304 = pneg %p46
        %p305 = pneg %p43
        %p306 = pneg %p67
        %p307 = pneg %p64
        %p308 = pneg %p88
        %p309 = pneg %p85
        %p310 = pneg %p109
        %p311 = pneg %p106
        %p312 = pneg %p130
        %p313 = pneg %p127
        %p314 = pneg %p151
        %p315 = pneg %p148
        %p316 = pneg %p172
        %p317 = pneg %p169
        %p318 = pneg %p193
        %p319 = pneg %p190
        %p320 = pneg %p219
        %p321 = pneg %p216
        %s322 = sand.u32 %s206, 1
        %s323 = scalar_lea.sflag [#allocation4], %s322
        %s324 = sand.u32 %s206, 1
        %s325 = smul.addr %s324, 256
        %s326 = scalar_lea.vmem [#allocation5], %s325
        %s327 = smul.u32 16, %s25
        %s328 = smul.u32 16, %s25
        %v329 = vld [vmem:[%s1] sm:$0xff]
        %v330 = vld [vmem:[%s1 + $0x8] sm:$0xff]
        %v331 = vld [vmem:[%s1 + $0x10] sm:$0xff]
        %v332 = vld [vmem:[%s1 + $0x18] sm:$0xff]
        %v333 = vld [vmem:[%s1 + $0x20] sm:$0xff]
        %v334 = vld [vmem:[%s1 + $0x28] sm:$0xff]
        %v335 = vld [vmem:[%s1 + $0x30] sm:$0xff]
        %v336 = vld [vmem:[%s1 + $0x38] sm:$0xff]
        %v337 = vld [vmem:[%s1 + $0x40] sm:$0xff]
        %v338 = vld [vmem:[%s1 + $0x48] sm:$0xff]
        %v339 = vld [vmem:[%s1 + $0x50] sm:$0xff]
        %v340 = vld [vmem:[%s1 + $0x58] sm:$0xff]
        %v341 = vld [vmem:[%s1 + $0x60] sm:$0xff]
        %v342 = vld [vmem:[%s1 + $0x68] sm:$0xff]
        %v343 = vld [vmem:[%s1 + $0x70] sm:$0xff]
        %v344 = vld [vmem:[%s1 + $0x78] sm:$0xff]
        %v345 = vld [vmem:[%s1 + $0x80] sm:$0xff]
        %v346 = vld [vmem:[%s1 + $0x88] sm:$0xff]
        %v347 = vld [vmem:[%s1 + $0x90] sm:$0xff]
        %v348 = vld [vmem:[%s1 + $0x98] sm:$0xff]
        %v349 = vld [vmem:[%s1 + $0xa0] sm:$0xff]
        %v350 = vld [vmem:[%s1 + $0xa8] sm:$0xff]
        %v351 = vld [vmem:[%s1 + $0xb0] sm:$0xff]
        %v352 = vld [vmem:[%s1 + $0xb8] sm:$0xff]
        %v353 = vld [vmem:[%s1 + $0xc0] sm:$0xff]
        %v354 = vld [vmem:[%s1 + $0xc8] sm:$0xff]
        %v355 = vld [vmem:[%s1 + $0xd0] sm:$0xff]
        %v356 = vld [vmem:[%s1 + $0xd8] sm:$0xff]
        %v357 = vld [vmem:[%s1 + $0xe0] sm:$0xff]
        %v358 = vld [vmem:[%s1 + $0xe8] sm:$0xff]
        %v359 = vld [vmem:[%s1 + $0xf0] sm:$0xff]
        %v360 = vld [vmem:[%s1 + $0xf8] sm:$0xff]
        %v361 = vld [vmem:[%s2] sm:$0x1]
        %v362 = vld [vmem:[%s3] sm:$0xff]
        %v363 = vld [vmem:[%s3 + $0x8] sm:$0xff]
        %v364 = vld [vmem:[%s3 + $0x10] sm:$0xff]
        %v365 = vld [vmem:[%s3 + $0x18] sm:$0xff]
        %v366 = vld [vmem:[%s3 + $0x20] sm:$0xff]
        %v367 = vld [vmem:[%s3 + $0x28] sm:$0xff]
        %v368 = vld [vmem:[%s3 + $0x30] sm:$0xff]
        %v369 = vld [vmem:[%s3 + $0x38] sm:$0xff]
        %v370 = vld [vmem:[%s3 + $0x40] sm:$0xff]
        %v371 = vld [vmem:[%s3 + $0x48] sm:$0xff]
        %v372 = vld [vmem:[%s3 + $0x50] sm:$0xff]
        %v373 = vld [vmem:[%s3 + $0x58] sm:$0xff]
        %v374 = vld [vmem:[%s3 + $0x60] sm:$0xff]
        %v375 = vld [vmem:[%s3 + $0x68] sm:$0xff]
        %v376 = vld [vmem:[%s3 + $0x70] sm:$0xff]
        %v377 = vld [vmem:[%s3 + $0x78] sm:$0xff]
        %v378 = vld [vmem:[%s4] sm:$0x1]
        %v379 = vld [vmem:[%s5] sm:$0x1]
        %v380 = vld [vmem:[%s6] sm:$0xff]
        %v381 = vld [vmem:[%s6 + $0x8] sm:$0xff]
        %v382 = vld [vmem:[%s6 + $0x10] sm:$0xff]
        %v383 = vld [vmem:[%s6 + $0x18] sm:$0xff]
        %v384 = vld [vmem:[%s6 + $0x20] sm:$0xff]
        %v385 = vld [vmem:[%s6 + $0x28] sm:$0xff]
        %v386 = vld [vmem:[%s6 + $0x30] sm:$0xff]
        %v387 = vld [vmem:[%s6 + $0x38] sm:$0xff]
        %v388 = vld [vmem:[%s6 + $0x40] sm:$0xff]
        %v389 = vld [vmem:[%s6 + $0x48] sm:$0xff]
        %v390 = vld [vmem:[%s6 + $0x50] sm:$0xff]
        %v391 = vld [vmem:[%s6 + $0x58] sm:$0xff]
        %v392 = vld [vmem:[%s6 + $0x60] sm:$0xff]
        %v393 = vld [vmem:[%s6 + $0x68] sm:$0xff]
        %v394 = vld [vmem:[%s6 + $0x70] sm:$0xff]
        %v395 = vld [vmem:[%s6 + $0x78] sm:$0xff]
        %v396 = vld [vmem:[%s6 + $0x80] sm:$0xff]
        %v397 = vld [vmem:[%s6 + $0x88] sm:$0xff]
        %v398 = vld [vmem:[%s6 + $0x90] sm:$0xff]
        %v399 = vld [vmem:[%s6 + $0x98] sm:$0xff]
        %v400 = vld [vmem:[%s6 + $0xa0] sm:$0xff]
        %v401 = vld [vmem:[%s6 + $0xa8] sm:$0xff]
        %v402 = vld [vmem:[%s6 + $0xb0] sm:$0xff]
        %v403 = vld [vmem:[%s6 + $0xb8] sm:$0xff]
        %v404 = vld [vmem:[%s6 + $0xc0] sm:$0xff]
        %v405 = vld [vmem:[%s6 + $0xc8] sm:$0xff]
        %v406 = vld [vmem:[%s6 + $0xd0] sm:$0xff]
        %v407 = vld [vmem:[%s6 + $0xd8] sm:$0xff]
        %v408 = vld [vmem:[%s6 + $0xe0] sm:$0xff]
        %v409 = vld [vmem:[%s6 + $0xe8] sm:$0xff]
        %v410 = vld [vmem:[%s6 + $0xf0] sm:$0xff]
        %v411 = vld [vmem:[%s6 + $0xf8] sm:$0xff]
        %v412 = vld [vmem:[%s7] sm:$0xff]
        %v413 = vld [vmem:[%s7 + $0x8] sm:$0xff]
        %v414 = vld [vmem:[%s7 + $0x10] sm:$0xff]
        %v415 = vld [vmem:[%s7 + $0x18] sm:$0xff]
        %v416 = vld [vmem:[%s7 + $0x20] sm:$0xff]
        %v417 = vld [vmem:[%s7 + $0x28] sm:$0xff]
        %v418 = vld [vmem:[%s7 + $0x30] sm:$0xff]
        %v419 = vld [vmem:[%s7 + $0x38] sm:$0xff]
        %v420 = vld [vmem:[%s7 + $0x40] sm:$0xff]
        %v421 = vld [vmem:[%s7 + $0x48] sm:$0xff]
        %v422 = vld [vmem:[%s7 + $0x50] sm:$0xff]
        %v423 = vld [vmem:[%s7 + $0x58] sm:$0xff]
        %v424 = vld [vmem:[%s7 + $0x60] sm:$0xff]
        %v425 = vld [vmem:[%s7 + $0x68] sm:$0xff]
        %v426 = vld [vmem:[%s7 + $0x70] sm:$0xff]
        %v427 = vld [vmem:[%s7 + $0x78] sm:$0xff]
        %v428 = vld [vmem:[%s293] sm:$0xff]
        %v429 = vld [vmem:[%s293 + $0x8] sm:$0xff]
        %v430 = vld [vmem:[%s293 + $0x10] sm:$0xff]
        %v431 = vld [vmem:[%s293 + $0x18] sm:$0xff]
        %v432 = vld [vmem:[%s293 + $0x20] sm:$0xff]
        %v433 = vld [vmem:[%s293 + $0x28] sm:$0xff]
        %v434 = vld [vmem:[%s293 + $0x30] sm:$0xff]
        %v435 = vld [vmem:[%s293 + $0x38] sm:$0xff]
        %v436 = vld [vmem:[%s293 + $0x40] sm:$0xff]
        %v437 = vld [vmem:[%s293 + $0x48] sm:$0xff]
        %v438 = vld [vmem:[%s293 + $0x50] sm:$0xff]
        %v439 = vld [vmem:[%s293 + $0x58] sm:$0xff]
        %v440 = vld [vmem:[%s293 + $0x60] sm:$0xff]
        %v441 = vld [vmem:[%s293 + $0x68] sm:$0xff]
        %v442 = vld [vmem:[%s293 + $0x70] sm:$0xff]
        %v443 = vld [vmem:[%s293 + $0x78] sm:$0xff]
        %v444 = vld [vmem:[%s293 + $0x80] sm:$0xff]
        %v445 = vld [vmem:[%s293 + $0x88] sm:$0xff]
        %v446 = vld [vmem:[%s293 + $0x90] sm:$0xff]
        %v447 = vld [vmem:[%s293 + $0x98] sm:$0xff]
        %v448 = vld [vmem:[%s293 + $0xa0] sm:$0xff]
        %v449 = vld [vmem:[%s293 + $0xa8] sm:$0xff]
        %v450 = vld [vmem:[%s293 + $0xb0] sm:$0xff]
        %v451 = vld [vmem:[%s293 + $0xb8] sm:$0xff]
        %v452 = vld [vmem:[%s293 + $0xc0] sm:$0xff]
        %v453 = vld [vmem:[%s293 + $0xc8] sm:$0xff]
        %v454 = vld [vmem:[%s293 + $0xd0] sm:$0xff]
        %v455 = vld [vmem:[%s293 + $0xd8] sm:$0xff]
        %v456 = vld [vmem:[%s293 + $0xe0] sm:$0xff]
        %v457 = vld [vmem:[%s293 + $0xe8] sm:$0xff]
        %v458 = vld [vmem:[%s293 + $0xf0] sm:$0xff]
        %v459 = vld [vmem:[%s293 + $0xf8] sm:$0xff]
        %v461 = vperm.slane %v361, 0
        %463 = vmatpush.msra.mxu0 %v344
        %464 = vmatpush.msra.mxu0 %v343
        %465 = vmatpush.msra.mxu0 %v342
        %466 = vmatpush.msra.mxu0 %v341
        %467 = vmatpush.msra.mxu0 %v340
        %468 = vmatpush.msra.mxu0 %v339
        %469 = vmatpush.msra.mxu0 %v338
        %470 = vmatpush.msra.mxu0 %v337
        %471 = vmatpush.msra.mxu0 %v336
        %472 = vmatpush.msra.mxu0 %v335
        %473 = vmatpush.msra.mxu0 %v334
        %474 = vmatpush.msra.mxu0 %v333
        %475 = vmatpush.msra.mxu0 %v332
        %476 = vmatpush.msra.mxu0 %v331
        %477 = vmatpush.msra.mxu0 %v330
        %478 = vmatpush.msra.mxu0 %v329
        %479 = vmatmul.f32.gmra.mxu0 %v428
        %v480 = vpop.f32.mrf.mxu0
        %v481 = vadd.f32 %v461, %v480
        %482 = vmatmul.f32.gmra.mxu0 %v430
        %v483 = vpop.f32.mrf.mxu0
        %v484 = vadd.f32 %v461, %v483
        %485 = vmatmul.f32.gmra.mxu0 %v432
        %v486 = vpop.f32.mrf.mxu0
        %v487 = vadd.f32 %v461, %v486
        %488 = vmatmul.f32.gmra.mxu0 %v434
        %v489 = vpop.f32.mrf.mxu0
        %v490 = vadd.f32 %v461, %v489
        %491 = vmatmul.f32.gmra.mxu0 %v436
        %v492 = vpop.f32.mrf.mxu0
        %v493 = vadd.f32 %v461, %v492
        %494 = vmatmul.f32.gmra.mxu0 %v438
        %v495 = vpop.f32.mrf.mxu0
        %v496 = vadd.f32 %v461, %v495
        %497 = vmatmul.f32.gmra.mxu0 %v440
        %v498 = vpop.f32.mrf.mxu0
        %v499 = vadd.f32 %v461, %v498
        %500 = vmatmul.f32.gmra.mxu0 %v442
        %v501 = vpop.f32.mrf.mxu0
        %v502 = vadd.f32 %v461, %v501
        %503 = vmatmul.f32.gmra.mxu0 %v444
        %v504 = vpop.f32.mrf.mxu0
        %v505 = vadd.f32 %v461, %v504
        %506 = vmatmul.f32.gmra.mxu0 %v446
        %v507 = vpop.f32.mrf.mxu0
        %v508 = vadd.f32 %v461, %v507
        %509 = vmatmul.f32.gmra.mxu0 %v448
        %v510 = vpop.f32.mrf.mxu0
        %v511 = vadd.f32 %v461, %v510
        %512 = vmatmul.f32.gmra.mxu0 %v450
        %v513 = vpop.f32.mrf.mxu0
        %v514 = vadd.f32 %v461, %v513
        %515 = vmatmul.f32.gmra.mxu0 %v452
        %v516 = vpop.f32.mrf.mxu0
        %v517 = vadd.f32 %v461, %v516
        %518 = vmatmul.f32.gmra.mxu0 %v454
        %v519 = vpop.f32.mrf.mxu0
        %v520 = vadd.f32 %v461, %v519
        %521 = vmatmul.f32.gmra.mxu0 %v456
        %v522 = vpop.f32.mrf.mxu0
        %v523 = vadd.f32 %v461, %v522
        %524 = vmatmul.f32.gmra.mxu0 %v458
        %v525 = vpop.f32.mrf.mxu0
        %v526 = vadd.f32 %v461, %v525
        %527 = vdwg.mxu0
        %528 = vmatpush.msra.mxu0 %v360
        %529 = vmatpush.msra.mxu0 %v359
        %530 = vmatpush.msra.mxu0 %v358
        %531 = vmatpush.msra.mxu0 %v357
        %532 = vmatpush.msra.mxu0 %v356
        %533 = vmatpush.msra.mxu0 %v355
        %534 = vmatpush.msra.mxu0 %v354
        %535 = vmatpush.msra.mxu0 %v353
        %536 = vmatpush.msra.mxu0 %v352
        %537 = vmatpush.msra.mxu0 %v351
        %538 = vmatpush.msra.mxu0 %v350
        %539 = vmatpush.msra.mxu0 %v349
        %540 = vmatpush.msra.mxu0 %v348
        %541 = vmatpush.msra.mxu0 %v347
        %542 = vmatpush.msra.mxu0 %v346
        %543 = vmatpush.msra.mxu0 %v345
        %544 = vmatmul.f32.gmra.mxu0 %v429
        %v545 = vpop.f32.mrf.mxu0
        %v546 = vadd.f32 %v481, %v545
        %547 = vmatmul.f32.gmra.mxu0 %v431
        %v548 = vpop.f32.mrf.mxu0
        %v549 = vadd.f32 %v484, %v548
        %550 = vmatmul.f32.gmra.mxu0 %v433
        %v551 = vpop.f32.mrf.mxu0
        %v552 = vadd.f32 %v487, %v551
        %553 = vmatmul.f32.gmra.mxu0 %v435
        %v554 = vpop.f32.mrf.mxu0
        %v555 = vadd.f32 %v490, %v554
        %556 = vmatmul.f32.gmra.mxu0 %v437
        %v557 = vpop.f32.mrf.mxu0
        %v558 = vadd.f32 %v493, %v557
        %559 = vmatmul.f32.gmra.mxu0 %v439
        %v560 = vpop.f32.mrf.mxu0
        %v561 = vadd.f32 %v496, %v560
        %562 = vmatmul.f32.gmra.mxu0 %v441
        %v563 = vpop.f32.mrf.mxu0
        %v564 = vadd.f32 %v499, %v563
        %565 = vmatmul.f32.gmra.mxu0 %v443
        %v566 = vpop.f32.mrf.mxu0
        %v567 = vadd.f32 %v502, %v566
        %568 = vmatmul.f32.gmra.mxu0 %v445
        %v569 = vpop.f32.mrf.mxu0
        %v570 = vadd.f32 %v505, %v569
        %571 = vmatmul.f32.gmra.mxu0 %v447
        %v572 = vpop.f32.mrf.mxu0
        %v573 = vadd.f32 %v508, %v572
        %574 = vmatmul.f32.gmra.mxu0 %v449
        %v575 = vpop.f32.mrf.mxu0
        %v576 = vadd.f32 %v511, %v575
        %577 = vmatmul.f32.gmra.mxu0 %v451
        %v578 = vpop.f32.mrf.mxu0
        %v579 = vadd.f32 %v514, %v578
        %580 = vmatmul.f32.gmra.mxu0 %v453
        %v581 = vpop.f32.mrf.mxu0
        %v582 = vadd.f32 %v517, %v581
        %583 = vmatmul.f32.gmra.mxu0 %v455
        %v584 = vpop.f32.mrf.mxu0
        %v585 = vadd.f32 %v520, %v584
        %586 = vmatmul.f32.gmra.mxu0 %v457
        %v587 = vpop.f32.mrf.mxu0
        %v588 = vadd.f32 %v523, %v587
        %589 = vmatmul.f32.gmra.mxu0 %v459
        %v590 = vpop.f32.mrf.mxu0
        %v591 = vadd.f32 %v526, %v590
        %592 = vdwg.mxu0
        %v593 = vtanh.pop %v546
        %v594 = vtanh.pop %v549
        %v595 = vtanh.pop %v552
        %v596 = vtanh.pop %v555
        %v597 = vtanh.pop %v558
        %v598 = vtanh.pop %v561
        %v599 = vtanh.pop %v564
        %v600 = vtanh.pop %v567
        %v601 = vtanh.pop %v570
        %v602 = vtanh.pop %v573
        %v603 = vtanh.pop %v576
        %v604 = vtanh.pop %v579
        %v605 = vtanh.pop %v582
        %v606 = vtanh.pop %v585
        %v607 = vtanh.pop %v588
        %v608 = vtanh.pop %v591
        %v610 = vperm.slane %v378, 0
        %612 = vmatpush.msra.mxu0 %v377
        %613 = vmatpush.msra.mxu0 %v376
        %614 = vmatpush.msra.mxu0 %v375
        %615 = vmatpush.msra.mxu0 %v374
        %616 = vmatpush.msra.mxu0 %v373
        %617 = vmatpush.msra.mxu0 %v372
        %618 = vmatpush.msra.mxu0 %v371
        %619 = vmatpush.msra.mxu0 %v370
        %620 = vmatpush.msra.mxu0 %v369
        %621 = vmatpush.msra.mxu0 %v368
        %622 = vmatpush.msra.mxu0 %v367
        %623 = vmatpush.msra.mxu0 %v366
        %624 = vmatpush.msra.mxu0 %v365
        %625 = vmatpush.msra.mxu0 %v364
        %626 = vmatpush.msra.mxu0 %v363
        %627 = vmatpush.msra.mxu0 %v362
        %628 = vmatmul.f32.gmra.mxu0 %v593
        %v629 = vpop.f32.mrf.mxu0
        %v630 = vadd.f32 %v610, %v629
        %631 = vmatmul.f32.gmra.mxu0 %v594
        %v632 = vpop.f32.mrf.mxu0
        %v633 = vadd.f32 %v610, %v632
        %634 = vmatmul.f32.gmra.mxu0 %v595
        %v635 = vpop.f32.mrf.mxu0
        %v636 = vadd.f32 %v610, %v635
        %637 = vmatmul.f32.gmra.mxu0 %v596
        %v638 = vpop.f32.mrf.mxu0
        %v639 = vadd.f32 %v610, %v638
        %640 = vmatmul.f32.gmra.mxu0 %v597
        %v641 = vpop.f32.mrf.mxu0
        %v642 = vadd.f32 %v610, %v641
        %643 = vmatmul.f32.gmra.mxu0 %v598
        %v644 = vpop.f32.mrf.mxu0
        %v645 = vadd.f32 %v610, %v644
        %646 = vmatmul.f32.gmra.mxu0 %v599
        %v647 = vpop.f32.mrf.mxu0
        %v648 = vadd.f32 %v610, %v647
        %649 = vmatmul.f32.gmra.mxu0 %v600
        %v650 = vpop.f32.mrf.mxu0
        %v651 = vadd.f32 %v610, %v650
        %652 = vmatmul.f32.gmra.mxu0 %v601
        %v653 = vpop.f32.mrf.mxu0
        %v654 = vadd.f32 %v610, %v653
        %655 = vmatmul.f32.gmra.mxu0 %v602
        %v656 = vpop.f32.mrf.mxu0
        %v657 = vadd.f32 %v610, %v656
        %658 = vmatmul.f32.gmra.mxu0 %v603
        %v659 = vpop.f32.mrf.mxu0
        %v660 = vadd.f32 %v610, %v659
        %661 = vmatmul.f32.gmra.mxu0 %v604
        %v662 = vpop.f32.mrf.mxu0
        %v663 = vadd.f32 %v610, %v662
        %664 = vmatmul.f32.gmra.mxu0 %v605
        %v665 = vpop.f32.mrf.mxu0
        %v666 = vadd.f32 %v610, %v665
        %667 = vmatmul.f32.gmra.mxu0 %v606
        %v668 = vpop.f32.mrf.mxu0
        %v669 = vadd.f32 %v610, %v668
        %670 = vmatmul.f32.gmra.mxu0 %v607
        %v671 = vpop.f32.mrf.mxu0
        %v672 = vadd.f32 %v610, %v671
        %673 = vmatmul.f32.gmra.mxu0 %v608
        %v674 = vpop.f32.mrf.mxu0
        %v675 = vadd.f32 %v610, %v674
        %676 = vdwg.mxu0
        %v677 = vtanh.pop %v630
        %v678 = vtanh.pop %v633
        %v679 = vtanh.pop %v636
        %v680 = vtanh.pop %v639
        %v681 = vtanh.pop %v642
        %v682 = vtanh.pop %v645
        %v683 = vtanh.pop %v648
        %v684 = vtanh.pop %v651
        %v685 = vtanh.pop %v654
        %v686 = vtanh.pop %v657
        %v687 = vtanh.pop %v660
        %v688 = vtanh.pop %v663
        %v689 = vtanh.pop %v666
        %v690 = vtanh.pop %v669
        %v691 = vtanh.pop %v672
        %v692 = vtanh.pop %v675
        %v693 = vmul.f32 %v677, %v677
        %v694 = vmul.f32 %v678, %v678
        %v695 = vmul.f32 %v679, %v679
        %v696 = vmul.f32 %v680, %v680
        %v697 = vmul.f32 %v681, %v681
        %v698 = vmul.f32 %v682, %v682
        %v699 = vmul.f32 %v683, %v683
        %v700 = vmul.f32 %v684, %v684
        %v701 = vmul.f32 %v685, %v685
        %v702 = vmul.f32 %v686, %v686
        %v703 = vmul.f32 %v687, %v687
        %v704 = vmul.f32 %v688, %v688
        %v705 = vmul.f32 %v689, %v689
        %v706 = vmul.f32 %v690, %v690
        %v707 = vmul.f32 %v691, %v691
        %v708 = vmul.f32 %v692, %v692
        %v709 = vsub.f32 1.0, %v693
        %v710 = vsub.f32 1.0, %v694
        %v711 = vsub.f32 1.0, %v695
        %v712 = vsub.f32 1.0, %v696
        %v713 = vsub.f32 1.0, %v697
        %v714 = vsub.f32 1.0, %v698
        %v715 = vsub.f32 1.0, %v699
        %v716 = vsub.f32 1.0, %v700
        %v717 = vsub.f32 1.0, %v701
        %v718 = vsub.f32 1.0, %v702
        %v719 = vsub.f32 1.0, %v703
        %v720 = vsub.f32 1.0, %v704
        %v721 = vsub.f32 1.0, %v705
        %v722 = vsub.f32 1.0, %v706
        %v723 = vsub.f32 1.0, %v707
        %v724 = vsub.f32 1.0, %v708
        %v726 = vperm.slane %v379, 0
        %v728 = vmul.f32 %v709, %v726
        %v729 = vmul.f32 %v710, %v726
        %v730 = vmul.f32 %v711, %v726
        %v731 = vmul.f32 %v712, %v726
        %v732 = vmul.f32 %v713, %v726
        %v733 = vmul.f32 %v714, %v726
        %v734 = vmul.f32 %v715, %v726
        %v735 = vmul.f32 %v716, %v726
        %v736 = vmul.f32 %v717, %v726
        %v737 = vmul.f32 %v718, %v726
        %v738 = vmul.f32 %v719, %v726
        %v739 = vmul.f32 %v720, %v726
        %v740 = vmul.f32 %v721, %v726
        %v741 = vmul.f32 %v722, %v726
        %v742 = vmul.f32 %v723, %v726
        %v743 = vmul.f32 %v724, %v726
        %v744 = vmul.f32 %v593, %v593
        %v745 = vmul.f32 %v594, %v594
        %v746 = vmul.f32 %v595, %v595
        %v747 = vmul.f32 %v596, %v596
        %v748 = vmul.f32 %v597, %v597
        %v749 = vmul.f32 %v598, %v598
        %v750 = vmul.f32 %v599, %v599
        %v751 = vmul.f32 %v600, %v600
        %v752 = vmul.f32 %v601, %v601
        %v753 = vmul.f32 %v602, %v602
        %v754 = vmul.f32 %v603, %v603
        %v755 = vmul.f32 %v604, %v604
        %v756 = vmul.f32 %v605, %v605
        %v757 = vmul.f32 %v606, %v606
        %v758 = vmul.f32 %v607, %v607
        %v759 = vmul.f32 %v608, %v608
        %v760 = vsub.f32 1.0, %v744
        %v761 = vsub.f32 1.0, %v745
        %v762 = vsub.f32 1.0, %v746
        %v763 = vsub.f32 1.0, %v747
        %v764 = vsub.f32 1.0, %v748
        %v765 = vsub.f32 1.0, %v749
        %v766 = vsub.f32 1.0, %v750
        %v767 = vsub.f32 1.0, %v751
        %v768 = vsub.f32 1.0, %v752
        %v769 = vsub.f32 1.0, %v753
        %v770 = vsub.f32 1.0, %v754
        %v771 = vsub.f32 1.0, %v755
        %v772 = vsub.f32 1.0, %v756
        %v773 = vsub.f32 1.0, %v757
        %v774 = vsub.f32 1.0, %v758
        %v775 = vsub.f32 1.0, %v759
        %776 = vmatpush.msra.mxu0 %v427
        %777 = vmatpush.msra.mxu0 %v426
        %778 = vmatpush.msra.mxu0 %v425
        %779 = vmatpush.msra.mxu0 %v424
        %780 = vmatpush.msra.mxu0 %v423
        %781 = vmatpush.msra.mxu0 %v422
        %782 = vmatpush.msra.mxu0 %v421
        %783 = vmatpush.msra.mxu0 %v420
        %784 = vmatpush.msra.mxu0 %v419
        %785 = vmatpush.msra.mxu0 %v418
        %786 = vmatpush.msra.mxu0 %v417
        %787 = vmatpush.msra.mxu0 %v416
        %788 = vmatpush.msra.mxu0 %v415
        %789 = vmatpush.msra.mxu0 %v414
        %790 = vmatpush.msra.mxu0 %v413
        %791 = vmatpush.msra.mxu0 %v412
        %792 = vmatmul.f32.gmra.mxu0 %v728
        %v793 = vpop.f32.mrf.mxu0
        %v794 = vadd.f32 0.0, %v793
        %795 = vmatmul.f32.gmra.mxu0 %v729
        %v796 = vpop.f32.mrf.mxu0
        %v797 = vadd.f32 0.0, %v796
        %798 = vmatmul.f32.gmra.mxu0 %v730
        %v799 = vpop.f32.mrf.mxu0
        %v800 = vadd.f32 0.0, %v799
        %801 = vmatmul.f32.gmra.mxu0 %v731
        %v802 = vpop.f32.mrf.mxu0
        %v803 = vadd.f32 0.0, %v802
        %804 = vmatmul.f32.gmra.mxu0 %v732
        %v805 = vpop.f32.mrf.mxu0
        %v806 = vadd.f32 0.0, %v805
        %807 = vmatmul.f32.gmra.mxu0 %v733
        %v808 = vpop.f32.mrf.mxu0
        %v809 = vadd.f32 0.0, %v808
        %810 = vmatmul.f32.gmra.mxu0 %v734
        %v811 = vpop.f32.mrf.mxu0
        %v812 = vadd.f32 0.0, %v811
        %813 = vmatmul.f32.gmra.mxu0 %v735
        %v814 = vpop.f32.mrf.mxu0
        %v815 = vadd.f32 0.0, %v814
        %816 = vmatmul.f32.gmra.mxu0 %v736
        %v817 = vpop.f32.mrf.mxu0
        %v818 = vadd.f32 0.0, %v817
        %819 = vmatmul.f32.gmra.mxu0 %v737
        %v820 = vpop.f32.mrf.mxu0
        %v821 = vadd.f32 0.0, %v820
        %822 = vmatmul.f32.gmra.mxu0 %v738
        %v823 = vpop.f32.mrf.mxu0
        %v824 = vadd.f32 0.0, %v823
        %825 = vmatmul.f32.gmra.mxu0 %v739
        %v826 = vpop.f32.mrf.mxu0
        %v827 = vadd.f32 0.0, %v826
        %828 = vmatmul.f32.gmra.mxu0 %v740
        %v829 = vpop.f32.mrf.mxu0
        %v830 = vadd.f32 0.0, %v829
        %831 = vmatmul.f32.gmra.mxu0 %v741
        %v832 = vpop.f32.mrf.mxu0
        %v833 = vadd.f32 0.0, %v832
        %834 = vmatmul.f32.gmra.mxu0 %v742
        %v835 = vpop.f32.mrf.mxu0
        %v836 = vadd.f32 0.0, %v835
        %837 = vmatmul.f32.gmra.mxu0 %v743
        %v838 = vpop.f32.mrf.mxu0
        %v839 = vadd.f32 0.0, %v838
        %840 = vdwg.mxu0
        %v841 = vmul.f32 %v760, %v794
        %v842 = vmul.f32 %v761, %v797
        %v843 = vmul.f32 %v762, %v800
        %v844 = vmul.f32 %v763, %v803
        %v845 = vmul.f32 %v764, %v806
        %v846 = vmul.f32 %v765, %v809
        %v847 = vmul.f32 %v766, %v812
        %v848 = vmul.f32 %v767, %v815
        %v849 = vmul.f32 %v768, %v818
        %v850 = vmul.f32 %v769, %v821
        %v851 = vmul.f32 %v770, %v824
        %v852 = vmul.f32 %v771, %v827
        %v853 = vmul.f32 %v772, %v830
        %v854 = vmul.f32 %v773, %v833
        %v855 = vmul.f32 %v774, %v836
        %v856 = vmul.f32 %v775, %v839
        %857 = vmatpush.msra.mxu0 %v410
        %858 = vmatpush.msra.mxu0 %v408
        %859 = vmatpush.msra.mxu0 %v406
        %860 = vmatpush.msra.mxu0 %v404
        %861 = vmatpush.msra.mxu0 %v402
        %862 = vmatpush.msra.mxu0 %v400
        %863 = vmatpush.msra.mxu0 %v398
        %864 = vmatpush.msra.mxu0 %v396
        %865 = vmatpush.msra.mxu0 %v394
        %866 = vmatpush.msra.mxu0 %v392
        %867 = vmatpush.msra.mxu0 %v390
        %868 = vmatpush.msra.mxu0 %v388
        %869 = vmatpush.msra.mxu0 %v386
        %870 = vmatpush.msra.mxu0 %v384
        %871 = vmatpush.msra.mxu0 %v382
        %872 = vmatpush.msra.mxu0 %v380
        %873 = vmatmul.f32.gmra.mxu0 %v841
        %v874 = vpop.f32.mrf.mxu0
        %v875 = vadd.f32 0.0, %v874
        %876 = vmatmul.f32.gmra.mxu0 %v842
        %v877 = vpop.f32.mrf.mxu0
        %v878 = vadd.f32 0.0, %v877
        %879 = vmatmul.f32.gmra.mxu0 %v843
        %v880 = vpop.f32.mrf.mxu0
        %v881 = vadd.f32 0.0, %v880
        %882 = vmatmul.f32.gmra.mxu0 %v844
        %v883 = vpop.f32.mrf.mxu0
        %v884 = vadd.f32 0.0, %v883
        %885 = vmatmul.f32.gmra.mxu0 %v845
        %v886 = vpop.f32.mrf.mxu0
        %v887 = vadd.f32 0.0, %v886
        %888 = vmatmul.f32.gmra.mxu0 %v846
        %v889 = vpop.f32.mrf.mxu0
        %v890 = vadd.f32 0.0, %v889
        %891 = vmatmul.f32.gmra.mxu0 %v847
        %v892 = vpop.f32.mrf.mxu0
        %v893 = vadd.f32 0.0, %v892
        %894 = vmatmul.f32.gmra.mxu0 %v848
        %v895 = vpop.f32.mrf.mxu0
        %v896 = vadd.f32 0.0, %v895
        %897 = vmatmul.f32.gmra.mxu0 %v849
        %v898 = vpop.f32.mrf.mxu0
        %v899 = vadd.f32 0.0, %v898
        %900 = vmatmul.f32.gmra.mxu0 %v850
        %v901 = vpop.f32.mrf.mxu0
        %v902 = vadd.f32 0.0, %v901
        %903 = vmatmul.f32.gmra.mxu0 %v851
        %v904 = vpop.f32.mrf.mxu0
        %v905 = vadd.f32 0.0, %v904
        %906 = vmatmul.f32.gmra.mxu0 %v852
        %v907 = vpop.f32.mrf.mxu0
        %v908 = vadd.f32 0.0, %v907
        %909 = vmatmul.f32.gmra.mxu0 %v853
        %v910 = vpop.f32.mrf.mxu0
        %v911 = vadd.f32 0.0, %v910
        %912 = vmatmul.f32.gmra.mxu0 %v854
        %v913 = vpop.f32.mrf.mxu0
        %v914 = vadd.f32 0.0, %v913
        %915 = vmatmul.f32.gmra.mxu0 %v855
        %v916 = vpop.f32.mrf.mxu0
        %v917 = vadd.f32 0.0, %v916
        %918 = vmatmul.f32.gmra.mxu0 %v856
        %v919 = vpop.f32.mrf.mxu0
        %v920 = vadd.f32 0.0, %v919
        %921 = vdwg.mxu0
        %922 = vmatpush.msra.mxu0 %v411
        %923 = vmatpush.msra.mxu0 %v409
        %924 = vmatpush.msra.mxu0 %v407
        %925 = vmatpush.msra.mxu0 %v405
        %926 = vmatpush.msra.mxu0 %v403
        %927 = vmatpush.msra.mxu0 %v401
        %928 = vmatpush.msra.mxu0 %v399
        %929 = vmatpush.msra.mxu0 %v397
        %930 = vmatpush.msra.mxu0 %v395
        %931 = vmatpush.msra.mxu0 %v393
        %932 = vmatpush.msra.mxu0 %v391
        %933 = vmatpush.msra.mxu0 %v389
        %934 = vmatpush.msra.mxu0 %v387
        %935 = vmatpush.msra.mxu0 %v385
        %936 = vmatpush.msra.mxu0 %v383
        %937 = vmatpush.msra.mxu0 %v381
        %938 = vmatmul.f32.gmra.mxu0 %v841
        %v939 = vpop.f32.mrf.mxu0
        %v940 = vadd.f32 0.0, %v939
        %941 = vmatmul.f32.gmra.mxu0 %v842
        %v942 = vpop.f32.mrf.mxu0
        %v943 = vadd.f32 0.0, %v942
        %944 = vmatmul.f32.gmra.mxu0 %v843
        %v945 = vpop.f32.mrf.mxu0
        %v946 = vadd.f32 0.0, %v945
        %947 = vmatmul.f32.gmra.mxu0 %v844
        %v948 = vpop.f32.mrf.mxu0
        %v949 = vadd.f32 0.0, %v948
        %950 = vmatmul.f32.gmra.mxu0 %v845
        %v951 = vpop.f32.mrf.mxu0
        %v952 = vadd.f32 0.0, %v951
        %953 = vmatmul.f32.gmra.mxu0 %v846
        %v954 = vpop.f32.mrf.mxu0
        %v955 = vadd.f32 0.0, %v954
        %956 = vmatmul.f32.gmra.mxu0 %v847
        %v957 = vpop.f32.mrf.mxu0
        %v958 = vadd.f32 0.0, %v957
        %959 = vmatmul.f32.gmra.mxu0 %v848
        %v960 = vpop.f32.mrf.mxu0
        %v961 = vadd.f32 0.0, %v960
        %962 = vmatmul.f32.gmra.mxu0 %v849
        %v963 = vpop.f32.mrf.mxu0
        %v964 = vadd.f32 0.0, %v963
        %965 = vmatmul.f32.gmra.mxu0 %v850
        %v966 = vpop.f32.mrf.mxu0
        %v967 = vadd.f32 0.0, %v966
        %968 = vmatmul.f32.gmra.mxu0 %v851
        %v969 = vpop.f32.mrf.mxu0
        %v970 = vadd.f32 0.0, %v969
        %971 = vmatmul.f32.gmra.mxu0 %v852
        %v972 = vpop.f32.mrf.mxu0
        %v973 = vadd.f32 0.0, %v972
        %974 = vmatmul.f32.gmra.mxu0 %v853
        %v975 = vpop.f32.mrf.mxu0
        %v976 = vadd.f32 0.0, %v975
        %977 = vmatmul.f32.gmra.mxu0 %v854
        %v978 = vpop.f32.mrf.mxu0
        %v979 = vadd.f32 0.0, %v978
        %980 = vmatmul.f32.gmra.mxu0 %v855
        %v981 = vpop.f32.mrf.mxu0
        %v982 = vadd.f32 0.0, %v981
        %983 = vmatmul.f32.gmra.mxu0 %v856
        %v984 = vpop.f32.mrf.mxu0
        %v985 = vadd.f32 0.0, %v984
        %986 = vdwg.mxu0
        %v987 = vmul.f32 %v940, 0.01
        %v988 = vmul.f32 %v943, 0.01
        %v989 = vmul.f32 %v946, 0.01
        %v990 = vmul.f32 %v949, 0.01
        %v991 = vmul.f32 %v952, 0.01
        %v992 = vmul.f32 %v955, 0.01
        %v993 = vmul.f32 %v958, 0.01
        %v994 = vmul.f32 %v961, 0.01
        %v995 = vmul.f32 %v964, 0.01
        %v996 = vmul.f32 %v967, 0.01
        %v997 = vmul.f32 %v970, 0.01
        %v998 = vmul.f32 %v973, 0.01
        %v999 = vmul.f32 %v976, 0.01
        %v1000 = vmul.f32 %v979, 0.01
        %v1001 = vmul.f32 %v982, 0.01
        %v1002 = vmul.f32 %v985, 0.01
        %v1003 = vadd.f32 %v428, %v987
        %v1004 = vadd.f32 %v430, %v988
        %v1005 = vadd.f32 %v432, %v989
        %v1006 = vadd.f32 %v434, %v990
        %v1007 = vadd.f32 %v436, %v991
        %v1008 = vadd.f32 %v438, %v992
        %v1009 = vadd.f32 %v440, %v993
        %v1010 = vadd.f32 %v442, %v994
        %v1011 = vadd.f32 %v444, %v995
        %v1012 = vadd.f32 %v446, %v996
        %v1013 = vadd.f32 %v448, %v997
        %v1014 = vadd.f32 %v450, %v998
        %v1015 = vadd.f32 %v452, %v999
        %v1016 = vadd.f32 %v454, %v1000
        %v1017 = vadd.f32 %v456, %v1001
        %v1018 = vadd.f32 %v458, %v1002
        %v1019 = vmul.f32 %v875, 0.01
        %v1020 = vmul.f32 %v878, 0.01
        %v1021 = vmul.f32 %v881, 0.01
        %v1022 = vmul.f32 %v884, 0.01
        %v1023 = vmul.f32 %v887, 0.01
        %v1024 = vmul.f32 %v890, 0.01
        %v1025 = vmul.f32 %v893, 0.01
        %v1026 = vmul.f32 %v896, 0.01
        %v1027 = vmul.f32 %v899, 0.01
        %v1028 = vmul.f32 %v902, 0.01
        %v1029 = vmul.f32 %v905, 0.01
        %v1030 = vmul.f32 %v908, 0.01
        %v1031 = vmul.f32 %v911, 0.01
        %v1032 = vmul.f32 %v914, 0.01
        %v1033 = vmul.f32 %v917, 0.01
        %v1034 = vmul.f32 %v920, 0.01
        %v1035 = vsub.f32 %v429, %v1019
        %v1036 = vsub.f32 %v431, %v1020
        %v1037 = vsub.f32 %v433, %v1021
        %v1038 = vsub.f32 %v435, %v1022
        %v1039 = vsub.f32 %v437, %v1023
        %v1040 = vsub.f32 %v439, %v1024
        %v1041 = vsub.f32 %v441, %v1025
        %v1042 = vsub.f32 %v443, %v1026
        %v1043 = vsub.f32 %v445, %v1027
        %v1044 = vsub.f32 %v447, %v1028
        %v1045 = vsub.f32 %v449, %v1029
        %v1046 = vsub.f32 %v451, %v1030
        %v1047 = vsub.f32 %v453, %v1031
        %v1048 = vsub.f32 %v455, %v1032
        %v1049 = vsub.f32 %v457, %v1033
        %v1050 = vsub.f32 %v459, %v1034
        %v1051 = vmul.f32 %v1035, %v1035
        %v1052 = vmul.f32 %v1036, %v1036
        %v1053 = vmul.f32 %v1037, %v1037
        %v1054 = vmul.f32 %v1038, %v1038
        %v1055 = vmul.f32 %v1039, %v1039
        %v1056 = vmul.f32 %v1040, %v1040
        %v1057 = vmul.f32 %v1041, %v1041
        %v1058 = vmul.f32 %v1042, %v1042
        %v1059 = vmul.f32 %v1043, %v1043
        %v1060 = vmul.f32 %v1044, %v1044
        %v1061 = vmul.f32 %v1045, %v1045
        %v1062 = vmul.f32 %v1046, %v1046
        %v1063 = vmul.f32 %v1047, %v1047
        %v1064 = vmul.f32 %v1048, %v1048
        %v1065 = vmul.f32 %v1049, %v1049
        %v1066 = vmul.f32 %v1050, %v1050
        %1067 = vadd.xlane.f32.xlu0 %v1051
        %v1068 = vpop.xlane.xlu0 %1067
        %1069 = vadd.xlane.f32.xlu0 %v1052
        %v1070 = vpop.xlane.xlu0 %1069
        %1071 = vadd.xlane.f32.xlu0 %v1053
        %v1072 = vpop.xlane.xlu0 %1071
        %1073 = vadd.xlane.f32.xlu0 %v1054
        %v1074 = vpop.xlane.xlu0 %1073
        %1075 = vadd.xlane.f32.xlu0 %v1055
        %v1076 = vpop.xlane.xlu0 %1075
        %1077 = vadd.xlane.f32.xlu0 %v1056
        %v1078 = vpop.xlane.xlu0 %1077
        %1079 = vadd.xlane.f32.xlu0 %v1057
        %v1080 = vpop.xlane.xlu0 %1079
        %1081 = vadd.xlane.f32.xlu0 %v1058
        %v1082 = vpop.xlane.xlu0 %1081
        %1083 = vadd.xlane.f32.xlu0 %v1059
        %v1084 = vpop.xlane.xlu0 %1083
        %1085 = vadd.xlane.f32.xlu0 %v1060
        %v1086 = vpop.xlane.xlu0 %1085
        %1087 = vadd.xlane.f32.xlu0 %v1061
        %v1088 = vpop.xlane.xlu0 %1087
        %1089 = vadd.xlane.f32.xlu0 %v1062
        %v1090 = vpop.xlane.xlu0 %1089
        %1091 = vadd.xlane.f32.xlu0 %v1063
        %v1092 = vpop.xlane.xlu0 %1091
        %1093 = vadd.xlane.f32.xlu0 %v1064
        %v1094 = vpop.xlane.xlu0 %1093
        %1095 = vadd.xlane.f32.xlu0 %v1065
        %v1096 = vpop.xlane.xlu0 %1095
        %1097 = vadd.xlane.f32.xlu0 %v1066
        %v1098 = vpop.xlane.xlu0 %1097
        %v1099 = vadd.f32 %v1068, 1e-08
        %v1100 = vadd.f32 %v1070, 1e-08
        %v1101 = vadd.f32 %v1072, 1e-08
        %v1102 = vadd.f32 %v1074, 1e-08
        %v1103 = vadd.f32 %v1076, 1e-08
        %v1104 = vadd.f32 %v1078, 1e-08
        %v1105 = vadd.f32 %v1080, 1e-08
        %v1106 = vadd.f32 %v1082, 1e-08
        %v1107 = vadd.f32 %v1084, 1e-08
        %v1108 = vadd.f32 %v1086, 1e-08
        %v1109 = vadd.f32 %v1088, 1e-08
        %v1110 = vadd.f32 %v1090, 1e-08
        %v1111 = vadd.f32 %v1092, 1e-08
        %v1112 = vadd.f32 %v1094, 1e-08
        %v1113 = vadd.f32 %v1096, 1e-08
        %v1114 = vadd.f32 %v1098, 1e-08
        %v1115 = vrsqrt.pop %v1099
        %v1116 = vmul.f32 %v1115, %v1099
        %v1117 = vmul.f32 %v1116, %v1115
        %v1118 = vmul.f32 0.5, %v1117
        %v1119 = vsub.f32 1.5, %v1118
        %v1120 = vmul.f32 %v1115, %v1119
        %vm1121 = vweird.f32 %v1099
        %vm1122 = vweird.f32 %v1115
        %vm1123 = vmor %vm1121, %vm1122
        %v1124 = vsel %vm1123, %v1115, %v1120
        %v1125 = vrsqrt.pop %v1100
        %v1126 = vmul.f32 %v1125, %v1100
        %v1127 = vmul.f32 %v1126, %v1125
        %v1128 = vmul.f32 0.5, %v1127
        %v1129 = vsub.f32 1.5, %v1128
        %v1130 = vmul.f32 %v1125, %v1129
        %vm1131 = vweird.f32 %v1100
        %vm1132 = vweird.f32 %v1125
        %vm1133 = vmor %vm1131, %vm1132
        %v1134 = vsel %vm1133, %v1125, %v1130
        %v1135 = vrsqrt.pop %v1101
        %v1136 = vmul.f32 %v1135, %v1101
        %v1137 = vmul.f32 %v1136, %v1135
        %v1138 = vmul.f32 0.5, %v1137
        %v1139 = vsub.f32 1.5, %v1138
        %v1140 = vmul.f32 %v1135, %v1139
        %vm1141 = vweird.f32 %v1101
        %vm1142 = vweird.f32 %v1135
        %vm1143 = vmor %vm1141, %vm1142
        %v1144 = vsel %vm1143, %v1135, %v1140
        %v1145 = vrsqrt.pop %v1102
        %v1146 = vmul.f32 %v1145, %v1102
        %v1147 = vmul.f32 %v1146, %v1145
        %v1148 = vmul.f32 0.5, %v1147
        %v1149 = vsub.f32 1.5, %v1148
        %v1150 = vmul.f32 %v1145, %v1149
        %vm1151 = vweird.f32 %v1102
        %vm1152 = vweird.f32 %v1145
        %vm1153 = vmor %vm1151, %vm1152
        %v1154 = vsel %vm1153, %v1145, %v1150
        %v1155 = vrsqrt.pop %v1103
        %v1156 = vmul.f32 %v1155, %v1103
        %v1157 = vmul.f32 %v1156, %v1155
        %v1158 = vmul.f32 0.5, %v1157
        %v1159 = vsub.f32 1.5, %v1158
        %v1160 = vmul.f32 %v1155, %v1159
        %vm1161 = vweird.f32 %v1103
        %vm1162 = vweird.f32 %v1155
        %vm1163 = vmor %vm1161, %vm1162
        %v1164 = vsel %vm1163, %v1155, %v1160
        %v1165 = vrsqrt.pop %v1104
        %v1166 = vmul.f32 %v1165, %v1104
        %v1167 = vmul.f32 %v1166, %v1165
        %v1168 = vmul.f32 0.5, %v1167
        %v1169 = vsub.f32 1.5, %v1168
        %v1170 = vmul.f32 %v1165, %v1169
        %vm1171 = vweird.f32 %v1104
        %vm1172 = vweird.f32 %v1165
        %vm1173 = vmor %vm1171, %vm1172
        %v1174 = vsel %vm1173, %v1165, %v1170
        %v1175 = vrsqrt.pop %v1105
        %v1176 = vmul.f32 %v1175, %v1105
        %v1177 = vmul.f32 %v1176, %v1175
        %v1178 = vmul.f32 0.5, %v1177
        %v1179 = vsub.f32 1.5, %v1178
        %v1180 = vmul.f32 %v1175, %v1179
        %vm1181 = vweird.f32 %v1105
        %vm1182 = vweird.f32 %v1175
        %vm1183 = vmor %vm1181, %vm1182
        %v1184 = vsel %vm1183, %v1175, %v1180
        %v1185 = vrsqrt.pop %v1106
        %v1186 = vmul.f32 %v1185, %v1106
        %v1187 = vmul.f32 %v1186, %v1185
        %v1188 = vmul.f32 0.5, %v1187
        %v1189 = vsub.f32 1.5, %v1188
        %v1190 = vmul.f32 %v1185, %v1189
        %vm1191 = vweird.f32 %v1106
        %vm1192 = vweird.f32 %v1185
        %vm1193 = vmor %vm1191, %vm1192
        %v1194 = vsel %vm1193, %v1185, %v1190
        %v1195 = vrsqrt.pop %v1107
        %v1196 = vmul.f32 %v1195, %v1107
        %v1197 = vmul.f32 %v1196, %v1195
        %v1198 = vmul.f32 0.5, %v1197
        %v1199 = vsub.f32 1.5, %v1198
        %v1200 = vmul.f32 %v1195, %v1199
        %vm1201 = vweird.f32 %v1107
        %vm1202 = vweird.f32 %v1195
        %vm1203 = vmor %vm1201, %vm1202
        %v1204 = vsel %vm1203, %v1195, %v1200
        %v1205 = vrsqrt.pop %v1108
        %v1206 = vmul.f32 %v1205, %v1108
        %v1207 = vmul.f32 %v1206, %v1205
        %v1208 = vmul.f32 0.5, %v1207
        %v1209 = vsub.f32 1.5, %v1208
        %v1210 = vmul.f32 %v1205, %v1209
        %vm1211 = vweird.f32 %v1108
        %vm1212 = vweird.f32 %v1205
        %vm1213 = vmor %vm1211, %vm1212
        %v1214 = vsel %vm1213, %v1205, %v1210
        %v1215 = vrsqrt.pop %v1109
        %v1216 = vmul.f32 %v1215, %v1109
        %v1217 = vmul.f32 %v1216, %v1215
        %v1218 = vmul.f32 0.5, %v1217
        %v1219 = vsub.f32 1.5, %v1218
        %v1220 = vmul.f32 %v1215, %v1219
        %vm1221 = vweird.f32 %v1109
        %vm1222 = vweird.f32 %v1215
        %vm1223 = vmor %vm1221, %vm1222
        %v1224 = vsel %vm1223, %v1215, %v1220
        %v1225 = vrsqrt.pop %v1110
        %v1226 = vmul.f32 %v1225, %v1110
        %v1227 = vmul.f32 %v1226, %v1225
        %v1228 = vmul.f32 0.5, %v1227
        %v1229 = vsub.f32 1.5, %v1228
        %v1230 = vmul.f32 %v1225, %v1229
        %vm1231 = vweird.f32 %v1110
        %vm1232 = vweird.f32 %v1225
        %vm1233 = vmor %vm1231, %vm1232
        %v1234 = vsel %vm1233, %v1225, %v1230
        %v1235 = vrsqrt.pop %v1111
        %v1236 = vmul.f32 %v1235, %v1111
        %v1237 = vmul.f32 %v1236, %v1235
        %v1238 = vmul.f32 0.5, %v1237
        %v1239 = vsub.f32 1.5, %v1238
        %v1240 = vmul.f32 %v1235, %v1239
        %vm1241 = vweird.f32 %v1111
        %vm1242 = vweird.f32 %v1235
        %vm1243 = vmor %vm1241, %vm1242
        %v1244 = vsel %vm1243, %v1235, %v1240
        %v1245 = vrsqrt.pop %v1112
        %v1246 = vmul.f32 %v1245, %v1112
        %v1247 = vmul.f32 %v1246, %v1245
        %v1248 = vmul.f32 0.5, %v1247
        %v1249 = vsub.f32 1.5, %v1248
        %v1250 = vmul.f32 %v1245, %v1249
        %vm1251 = vweird.f32 %v1112
        %vm1252 = vweird.f32 %v1245
        %vm1253 = vmor %vm1251, %vm1252
        %v1254 = vsel %vm1253, %v1245, %v1250
        %v1255 = vrsqrt.pop %v1113
        %v1256 = vmul.f32 %v1255, %v1113
        %v1257 = vmul.f32 %v1256, %v1255
        %v1258 = vmul.f32 0.5, %v1257
        %v1259 = vsub.f32 1.5, %v1258
        %v1260 = vmul.f32 %v1255, %v1259
        %vm1261 = vweird.f32 %v1113
        %vm1262 = vweird.f32 %v1255
        %vm1263 = vmor %vm1261, %vm1262
        %v1264 = vsel %vm1263, %v1255, %v1260
        %v1265 = vrsqrt.pop %v1114
        %v1266 = vmul.f32 %v1265, %v1114
        %v1267 = vmul.f32 %v1266, %v1265
        %v1268 = vmul.f32 0.5, %v1267
        %v1269 = vsub.f32 1.5, %v1268
        %v1270 = vmul.f32 %v1265, %v1269
        %vm1271 = vweird.f32 %v1114
        %vm1272 = vweird.f32 %v1265
        %vm1273 = vmor %vm1271, %vm1272
        %v1274 = vsel %vm1273, %v1265, %v1270
        %v1275 = vmul.f32 %v1035, %v1124
        %v1276 = vmul.f32 %v1036, %v1134
        %v1277 = vmul.f32 %v1037, %v1144
        %v1278 = vmul.f32 %v1038, %v1154
        %v1279 = vmul.f32 %v1039, %v1164
        %v1280 = vmul.f32 %v1040, %v1174
        %v1281 = vmul.f32 %v1041, %v1184
        %v1282 = vmul.f32 %v1042, %v1194
        %v1283 = vmul.f32 %v1043, %v1204
        %v1284 = vmul.f32 %v1044, %v1214
        %v1285 = vmul.f32 %v1045, %v1224
        %v1286 = vmul.f32 %v1046, %v1234
        %v1287 = vmul.f32 %v1047, %v1244
        %v1288 = vmul.f32 %v1048, %v1254
        %v1289 = vmul.f32 %v1049, %v1264
        %v1290 = vmul.f32 %v1050, %v1274
        %1291 = vst [vmem:[%s326] sm:$0xff] %v1003
        %1292 = vst [vmem:[%s326 + $0x10] sm:$0xff] %v1004
        %1293 = vst [vmem:[%s326 + $0x20] sm:$0xff] %v1005
        %1294 = vst [vmem:[%s326 + $0x30] sm:$0xff] %v1006
        %1295 = vst [vmem:[%s326 + $0x40] sm:$0xff] %v1007
        %1296 = vst [vmem:[%s326 + $0x50] sm:$0xff] %v1008
        %1297 = vst [vmem:[%s326 + $0x60] sm:$0xff] %v1009
        %1298 = vst [vmem:[%s326 + $0x70] sm:$0xff] %v1010
        %1299 = vst [vmem:[%s326 + $0x80] sm:$0xff] %v1011
        %1300 = vst [vmem:[%s326 + $0x90] sm:$0xff] %v1012
        %1301 = vst [vmem:[%s326 + $0xa0] sm:$0xff] %v1013
        %1302 = vst [vmem:[%s326 + $0xb0] sm:$0xff] %v1014
        %1303 = vst [vmem:[%s326 + $0xc0] sm:$0xff] %v1015
        %1304 = vst [vmem:[%s326 + $0xd0] sm:$0xff] %v1016
        %1305 = vst [vmem:[%s326 + $0xe0] sm:$0xff] %v1017
        %1306 = vst [vmem:[%s326 + $0xf0] sm:$0xff] %v1018
        %1307 = vst [vmem:[%s326 + $0x8] sm:$0xff] %v1275
        %1308 = vst [vmem:[%s326 + $0x18] sm:$0xff] %v1276
        %1309 = vst [vmem:[%s326 + $0x28] sm:$0xff] %v1277
        %1310 = vst [vmem:[%s326 + $0x38] sm:$0xff] %v1278
        %1311 = vst [vmem:[%s326 + $0x48] sm:$0xff] %v1279
        %1312 = vst [vmem:[%s326 + $0x58] sm:$0xff] %v1280
        %1313 = vst [vmem:[%s326 + $0x68] sm:$0xff] %v1281
        %1314 = vst [vmem:[%s326 + $0x78] sm:$0xff] %v1282
        %1315 = vst [vmem:[%s326 + $0x88] sm:$0xff] %v1283
        %1316 = vst [vmem:[%s326 + $0x98] sm:$0xff] %v1284
        %1317 = vst [vmem:[%s326 + $0xa8] sm:$0xff] %v1285
        %1318 = vst [vmem:[%s326 + $0xb8] sm:$0xff] %v1286
        %1319 = vst [vmem:[%s326 + $0xc8] sm:$0xff] %v1287
        %1320 = vst [vmem:[%s326 + $0xd8] sm:$0xff] %v1288
        %1321 = vst [vmem:[%s326 + $0xe8] sm:$0xff] %v1289
        %1322 = vst [vmem:[%s326 + $0xf8] sm:$0xff] %v1290
        %s1323 = sand.u32 %s206, 1
        %s1324 = scalar_lea.sflag [#allocation4], %s1323
        %s1325 = sand.u32 %s206, 1
        %s1326 = smul.addr %s1325, 256
        %s1327 = scalar_lea.vmem [#allocation5], %s1326
        // Predicated region
        $region57: #{tpu_custom_call.1} parent=51 // pred_check
          %p1328 = pneg %p216
        $region58: #{tpu_custom_call.1} parent=51 // pred_check_branch
          %1330 = sbr.rel (%p1328) target = $region60
        $region59: #{tpu_custom_call.1} parent=51 // pred_region
          %s1331 = smul.u32 16, %s25
          %1333 = vsyncadd %s1324, 0
          %s1334 = smul.addr %s1331, 2
          %s1335 = smul.addr %s1334, 8
          %s1336 = scalar_lea.hbm %s8, %s1335
          %s1337 = sshll.u32 %s1327, 4
          %s1338 = int_to_ptr.vmem [resolvable:$true] %s1337
          %s1339 = sshll.u32 %s1336, 4
          %s1340 = int_to_ptr.hbm [resolvable:$true] %s1339
          %1345 = dma.vmem_to_hbm [thread:$0]  %s1338, 4096, %s1340, %s1324, 256, 256, 16
        $region60: #{tpu_custom_call.1} parent=51 // pred_fallthru
          _
      $region52: #{tpu_custom_call.1} parent=5 // pred_fallthru
        _
      %p1346 = scmp.le.s32.totalorder 2, %s20
      // Predicated region
      $region61: #{tpu_custom_call.1} parent=5 // pred_check
        %p1347 = pneg %p1346
      $region62: #{tpu_custom_call.1} parent=5 // pred_check_branch
        %1349 = sbr.rel (%p1347) target = $region64
      $region63: #{tpu_custom_call.1} parent=5 // pred_region
        %s1350 = ssub.s32 %s20, 2
        // Predicated region
        $region65: #{tpu_custom_call.1} parent=63 // pred_check
          %p1351 = pneg %p222
        $region66: #{tpu_custom_call.1} parent=63 // pred_check_branch
          %1353 = sbr.rel (%p1351) target = $region68
        $region67: #{tpu_custom_call.1} parent=63 // pred_region
          %s1354 = sand.u32 %s207, 1
          %s1355 = scalar_lea.sflag [#allocation4], %s1354
          %s1356 = sand.u32 %s207, 1
          %s1357 = smul.addr %s1356, 256
          %s1358 = scalar_lea.vmem [#allocation5], %s1357
          %1360 = dma.done %s1355, 4096
        $region68: #{tpu_custom_call.1} parent=63 // pred_fallthru
          _
      $region64: #{tpu_custom_call.1} parent=5 // pred_fallthru
        _
    $region6: #{tpu_custom_call.1} parent=1 // loop_footer
      %s24 = sadd.s32 1, %s20
    $region7: #{tpu_custom_call.1} parent=1 // loop_footer_branch
      %19 = sbr.rel target = $region3
    $region8: #{tpu_custom_call.1} parent=1 // loop_exit
      _
    %1361 = vsyncpa [#allocation3], 1
    %s1362 = scalar_lea.sflag [#allocation3], 1
    %1363 = vsyncpa %s1362, 1
    %1364 = vsyncpa [#allocation4], 1
    %s1365 = scalar_lea.sflag [#allocation4], 1
    %1366 = vsyncpa %s1365, 1

</llo_original>
